<compile_context>
chip_gen: v7x
topology: tpu7x:2x2x1
jax: 0.10.0
libtpu: 0.0.40
codegen_flags: <defaults>
</compile_context>

<pallas_src>
import jax
import jax.numpy as jnp
from jax.experimental import pallas as pl
from jax.experimental.pallas import tpu as pltpu


def _round_up(x, m):
    return (x + m - 1) // m * m


def _make_kernel(C_in, C_hid, C_out, P_pad, margin, shifts):
    K1 = 9 * C_in

    def kernel(x_ref, mask_ref, w1c_ref, w2c_ref, w3c_ref, out_ref,
               x1im_ref, h1s_ref):
        # ---- conv1 (3x3 SAME) + ReLU: tiny im2col (9*C_in rows) built by 9
        #      shifted row copies, then one MXU matmul with K = 9*C_in.
        for t, s in enumerate(shifts):
            x1im_ref[t * C_in:(t + 1) * C_in, :] = (
                x_ref[:, margin + s:margin + s + P_pad])
        w1 = w1c_ref[:, :K1]
        b1 = w1c_ref[:, K1:K1 + 1]
        h1 = jnp.dot(w1, x1im_ref[...], preferred_element_type=jnp.float32)
        # zero halo ring + lane-pad region so conv2 sees SAME-padding zeros
        h1 = jnp.maximum(h1 + b1, 0.0) * mask_ref[...]          # (C_hid, P_pad)

        # ---- stage masked h1 in a margin-padded scratch; only the two
        #      margin strips are zero-filled (no full-buffer memset).
        h1s_ref[:, :margin] = jnp.zeros((C_hid, margin), jnp.float32)
        h1s_ref[:, margin + P_pad:] = jnp.zeros((C_hid, margin), jnp.float32)
        h1s_ref[:, margin:margin + P_pad] = h1

        # ---- conv2 (3x3 SAME) + ReLU: 9 accumulated MXU matmuls (K = C_hid)
        #      over shifted lane windows -- no im2col stores/reloads.
        w2 = w2c_ref[:, :9 * C_hid]
        b2 = w2c_ref[:, 9 * C_hid:9 * C_hid + 1]
        acc = jnp.zeros((C_hid, P_pad), jnp.float32)
        for t, s in enumerate(shifts):
            acc = acc + jnp.dot(
                w2[:, t * C_hid:(t + 1) * C_hid],
                h1s_ref[:, margin + s:margin + s + P_pad],
                preferred_element_type=jnp.float32)
        h2 = jnp.maximum(acc + b2, 0.0)                          # (C_hid, P_pad)

        # ---- 1x1 head + sigmoid. w3 rows are duplicated in the wrapper so a
        #      single (2*C_out, C_hid) matmul produces an 8-sublane block:
        #      rows [0, C_out)   -> sigmoid(logits)
        #      rows [C_out, 2*C_out) -> raw logits
        w3 = w3c_ref[:, :C_hid]
        b3 = w3c_ref[:, C_hid:C_hid + 1]
        ll = jnp.dot(w3, h2, preferred_element_type=jnp.float32) + b3
        row = jax.lax.broadcasted_iota(jnp.int32, (2 * C_out, P_pad), 0)
        out_ref[...] = jnp.where(row < C_out, jax.nn.sigmoid(ll), ll)

    return kernel


def pspnet_forward(x_nchw, params):
    """Returns (sigmoid(logits), logits), both NCHW, matching the torch module."""
    w1, b1, w2, b2, w3, b3 = params
    N, C_in, H, W = x_nchw.shape
    C_hid = w1.shape[-1]
    C_out = w3.shape[-1]

    Hp, Wp = H + 2, W + 2
    P = Hp * Wp
    P_pad = _round_up(P, 128)                 # lane-aligned flat image size
    margin = _round_up(Wp + 1, 128)           # 128-aligned halo for tap shifts
    Wtot = margin + P_pad + margin
    shifts = [(dh - 1) * Wp + (dw - 1) for dh in range(3) for dw in range(3)]

    # ---- wrapper-side re-layouts (a few KB each) ----
    xp = jnp.pad(x_nchw.astype(jnp.float32),
                 ((0, 0), (0, 0), (1, 1), (1, 1)))               # (N,C_in,Hp,Wp)
    xf = xp.reshape(N, C_in, P)
    x_in = jnp.pad(xf, ((0, 0), (0, 0), (margin, margin + P_pad - P)))

    hp = jnp.arange(Hp)
    wc = jnp.arange(Wp)
    inter = (((hp >= 1) & (hp <= H))[:, None] &
             ((wc >= 1) & (wc <= W))[None, :]).reshape(P)
    mask = jnp.pad(inter.astype(jnp.float32), (0, P_pad - P)).reshape(1, P_pad)

    # pack weights (+bias as last column); duplicate the head for the stacked
    # (sigmoid | logits) output block.
    w1m = w1.reshape(9 * C_in, C_hid).T                          # (C_hid, 9*C_in)
    w2m = w2.reshape(9 * C_hid, C_hid).T                         # (C_hid, 9*C_hid)
    w3m = w3.T                                                   # (C_out, C_hid)
    w1c = jnp.concatenate([w1m, b1.reshape(C_hid, 1)], axis=1)
    w2c = jnp.concatenate([w2m, b2.reshape(C_hid, 1)], axis=1)
    w3d = jnp.concatenate([w3m, w3m], axis=0)                    # (2*C_out, C_hid)
    b3d = jnp.concatenate([b3, b3], axis=0).reshape(2 * C_out, 1)
    w3c = jnp.concatenate([w3d, b3d], axis=1)

    kernel = _make_kernel(C_in, C_hid, C_out, P_pad, margin, shifts)

    grid_spec = pltpu.PrefetchScalarGridSpec(
        num_scalar_prefetch=0,
        grid=(N,),                                   # one image per grid step
        in_specs=[
            pl.BlockSpec((None, C_in, Wtot), lambda n: (n, 0, 0)),
            pl.BlockSpec((1, P_pad), lambda n: (0, 0)),
            pl.BlockSpec((C_hid, 9 * C_in + 1), lambda n: (0, 0)),
            pl.BlockSpec((C_hid, 9 * C_hid + 1), lambda n: (0, 0)),
            pl.BlockSpec((2 * C_out, C_hid + 1), lambda n: (0, 0)),
        ],
        out_specs=pl.BlockSpec((None, 2 * C_out, P_pad), lambda n: (n, 0, 0)),
        scratch_shapes=[
            pltpu.VMEM((9 * C_in, P_pad), jnp.float32),          # conv1 im2col
            pltpu.VMEM((C_hid, Wtot), jnp.float32),              # margin-padded h1
        ],
    )

    out = pl.pallas_call(
        kernel,
        out_shape=jax.ShapeDtypeStruct((N, 2 * C_out, P_pad), jnp.float32),
        grid_spec=grid_spec,
        compiler_params=pltpu.CompilerParams(
            dimension_semantics=("parallel",),
            vmem_limit_bytes=32 * 1024 * 1024),
    )(x_in, mask, w1c, w2c, w3c)

    def unflatten(y):                       # (N, C_out, P_pad) -> (N, C_out, H, W)
        return y[:, :, :P].reshape(N, C_out, Hp, Wp)[:, :, 1:H + 1, 1:W + 1]

    return unflatten(out[:, :C_out, :]), unflatten(out[:, C_out:, :])


def init_params(key, C_in=1, C_hid=16, C_out=4):
    k1, k2, k3, k4, k5, k6 = jax.random.split(key, 6)
    w1 = 0.2 * jax.random.normal(k1, (3, 3, C_in, C_hid), jnp.float32)
    b1 = 0.1 * jax.random.normal(k2, (C_hid,), jnp.float32)
    w2 = 0.1 * jax.random.normal(k3, (3, 3, C_hid, C_hid), jnp.float32)
    b2 = 0.1 * jax.random.normal(k4, (C_hid,), jnp.float32)
    w3 = 0.2 * jax.random.normal(k5, (C_hid, C_out), jnp.float32)
    b3 = 0.1 * jax.random.normal(k6, (C_out,), jnp.float32)
    return (w1, b1, w2, b2, w3, b3)


def ref_forward(x_nchw, params):
    """Pure-JAX reference (lax convs) for correctness checking."""
    w1, b1, w2, b2, w3, b3 = params
    dn = ("NHWC", "HWIO", "NHWC")
    x = jnp.transpose(x_nchw, (0, 2, 3, 1)).astype(jnp.float32)
    h1 = jnp.maximum(jax.lax.conv_general_dilated(
        x, w1, (1, 1), "SAME", dimension_numbers=dn) + b1, 0.0)
    h2 = jnp.maximum(jax.lax.conv_general_dilated(
        h1, w2, (1, 1), "SAME", dimension_numbers=dn) + b2, 0.0)
    logits = jnp.einsum("nhwc,co->nhwo", h2, w3) + b3
    sig = jax.nn.sigmoid(logits)
    return (jnp.transpose(sig, (0, 3, 1, 2)),
            jnp.transpose(logits, (0, 3, 1, 2)))


if __name__ == "__main__":
    key = jax.random.PRNGKey(0)
    kx, kp = jax.random.split(key)

    N, C_in, H, W = 2, 1, 16, 16          # module defaults: in_channels=1, classes=4
    x = jax.random.normal(kx, (N, C_in, H, W), jnp.float32)
    params = init_params(kp, C_in=C_in, C_hid=16, C_out=4)

    sig, logits = pspnet_forward(x, params)
    jax.block_until_ready((sig, logits))

    ref_sig, ref_logits = ref_forward(x, params)
    assert sig.shape == (N, 4, H, W) and logits.shape == (N, 4, H, W)
    assert jnp.allclose(logits, ref_logits, atol=1e-4, rtol=1e-4)
    assert jnp.allclose(sig, ref_sig, atol=1e-5, rtol=1e-4)

    print("KERNEL_OK")
</pallas_src>

<mosaic_0001>
module attributes {stable_mosaic.version = 11 : i64} {
  func.func @kernel(%arg0: i32, %arg1: memref<1x1x640xf32, #tpu.memory_space<vmem>>, %arg2: memref<1x384xf32, #tpu.memory_space<vmem>>, %arg3: memref<16x10xf32, #tpu.memory_space<vmem>>, %arg4: memref<16x145xf32, #tpu.memory_space<vmem>>, %arg5: memref<8x17xf32, #tpu.memory_space<vmem>>, %arg6: memref<1x8x384xf32, #tpu.memory_space<vmem>>, %arg7: memref<9x384xf32, #tpu.memory_space<vmem>>, %arg8: memref<16x640xf32, #tpu.memory_space<vmem>>) attributes {dimension_semantics = [#tpu.dimension_semantics<parallel>], iteration_bounds = array<i64: 2>, scalar_prefetch = 0 : i64, scratch_operands = 2 : i64, tpu.core_type = #tpu.core_type<tc>, window_params = [{transform_indices = @transform_0, window_bounds = array<i64: 1, 1, 640>}, {pipeline_mode = #tpu.pipeline_mode<synchronous>, transform_indices = @transform_1, window_bounds = array<i64: 1, 384>}, {pipeline_mode = #tpu.pipeline_mode<synchronous>, transform_indices = @transform_2, window_bounds = array<i64: 16, 10>}, {pipeline_mode = #tpu.pipeline_mode<synchronous>, transform_indices = @transform_3, window_bounds = array<i64: 16, 145>}, {pipeline_mode = #tpu.pipeline_mode<synchronous>, transform_indices = @transform_4, window_bounds = array<i64: 8, 17>}, {transform_indices = @transform_5, window_bounds = array<i64: 1, 8, 384>}]} {
    %c0 = arith.constant 0 : index
    %c0_0 = arith.constant 0 : index
    %c109 = arith.constant 109 : index
    %0 = vector.load %arg1[%c0, %c0_0, %c109] : memref<1x1x640xf32, #tpu.memory_space<vmem>>, vector<1x1x384xf32>
    %1 = vector.shape_cast %0 : vector<1x1x384xf32> to vector<1x384xf32>
    %c0_1 = arith.constant 0 : index
    %c0_2 = arith.constant 0 : index
    %2 = vector.load %arg7[%c0_1, %c0_2] : memref<9x384xf32, #tpu.memory_space<vmem>>, vector<1x384xf32>
    tpu.vector_store %arg7[%c0_1, %c0_2], %1 {strides = array<i32>} : memref<9x384xf32, #tpu.memory_space<vmem>>, vector<1x384xf32>,
    %c0_3 = arith.constant 0 : index
    %c0_4 = arith.constant 0 : index
    %c110 = arith.constant 110 : index
    %3 = vector.load %arg1[%c0_3, %c0_4, %c110] : memref<1x1x640xf32, #tpu.memory_space<vmem>>, vector<1x1x384xf32>
    %4 = vector.shape_cast %3 : vector<1x1x384xf32> to vector<1x384xf32>
    %c1 = arith.constant 1 : index
    %c0_5 = arith.constant 0 : index
    %5 = vector.load %arg7[%c1, %c0_5] : memref<9x384xf32, #tpu.memory_space<vmem>>, vector<1x384xf32>
    tpu.vector_store %arg7[%c1, %c0_5], %4 {strides = array<i32>} : memref<9x384xf32, #tpu.memory_space<vmem>>, vector<1x384xf32>,
    %c0_6 = arith.constant 0 : index
    %c0_7 = arith.constant 0 : index
    %c111 = arith.constant 111 : index
    %6 = vector.load %arg1[%c0_6, %c0_7, %c111] : memref<1x1x640xf32, #tpu.memory_space<vmem>>, vector<1x1x384xf32>
    %7 = vector.shape_cast %6 : vector<1x1x384xf32> to vector<1x384xf32>
    %c2 = arith.constant 2 : index
    %c0_8 = arith.constant 0 : index
    %8 = vector.load %arg7[%c2, %c0_8] : memref<9x384xf32, #tpu.memory_space<vmem>>, vector<1x384xf32>
    tpu.vector_store %arg7[%c2, %c0_8], %7 {strides = array<i32>} : memref<9x384xf32, #tpu.memory_space<vmem>>, vector<1x384xf32>,
    %c0_9 = arith.constant 0 : index
    %c0_10 = arith.constant 0 : index
    %c127 = arith.constant 127 : index
    %9 = vector.load %arg1[%c0_9, %c0_10, %c127] : memref<1x1x640xf32, #tpu.memory_space<vmem>>, vector<1x1x384xf32>
    %10 = vector.shape_cast %9 : vector<1x1x384xf32> to vector<1x384xf32>
    %c3 = arith.constant 3 : index
    %c0_11 = arith.constant 0 : index
    %11 = vector.load %arg7[%c3, %c0_11] : memref<9x384xf32, #tpu.memory_space<vmem>>, vector<1x384xf32>
    tpu.vector_store %arg7[%c3, %c0_11], %10 {strides = array<i32>} : memref<9x384xf32, #tpu.memory_space<vmem>>, vector<1x384xf32>,
    %c0_12 = arith.constant 0 : index
    %c0_13 = arith.constant 0 : index
    %c128 = arith.constant 128 : index
    %12 = vector.load %arg1[%c0_12, %c0_13, %c128] : memref<1x1x640xf32, #tpu.memory_space<vmem>>, vector<1x1x384xf32>
    %13 = vector.shape_cast %12 : vector<1x1x384xf32> to vector<1x384xf32>
    %c4 = arith.constant 4 : index
    %c0_14 = arith.constant 0 : index
    %14 = vector.load %arg7[%c4, %c0_14] : memref<9x384xf32, #tpu.memory_space<vmem>>, vector<1x384xf32>
    tpu.vector_store %arg7[%c4, %c0_14], %13 {strides = array<i32>} : memref<9x384xf32, #tpu.memory_space<vmem>>, vector<1x384xf32>,
    %c0_15 = arith.constant 0 : index
    %c0_16 = arith.constant 0 : index
    %c129 = arith.constant 129 : index
    %15 = vector.load %arg1[%c0_15, %c0_16, %c129] : memref<1x1x640xf32, #tpu.memory_space<vmem>>, vector<1x1x384xf32>
    %16 = vector.shape_cast %15 : vector<1x1x384xf32> to vector<1x384xf32>
    %c5 = arith.constant 5 : index
    %c0_17 = arith.constant 0 : index
    %17 = vector.load %arg7[%c5, %c0_17] : memref<9x384xf32, #tpu.memory_space<vmem>>, vector<1x384xf32>
    tpu.vector_store %arg7[%c5, %c0_17], %16 {strides = array<i32>} : memref<9x384xf32, #tpu.memory_space<vmem>>, vector<1x384xf32>,
    %c0_18 = arith.constant 0 : index
    %c0_19 = arith.constant 0 : index
    %c145 = arith.constant 145 : index
    %18 = vector.load %arg1[%c0_18, %c0_19, %c145] : memref<1x1x640xf32, #tpu.memory_space<vmem>>, vector<1x1x384xf32>
    %19 = vector.shape_cast %18 : vector<1x1x384xf32> to vector<1x384xf32>
    %c6 = arith.constant 6 : index
    %c0_20 = arith.constant 0 : index
    %20 = vector.load %arg7[%c6, %c0_20] : memref<9x384xf32, #tpu.memory_space<vmem>>, vector<1x384xf32>
    tpu.vector_store %arg7[%c6, %c0_20], %19 {strides = array<i32>} : memref<9x384xf32, #tpu.memory_space<vmem>>, vector<1x384xf32>,
    %c0_21 = arith.constant 0 : index
    %c0_22 = arith.constant 0 : index
    %c146 = arith.constant 146 : index
    %21 = vector.load %arg1[%c0_21, %c0_22, %c146] : memref<1x1x640xf32, #tpu.memory_space<vmem>>, vector<1x1x384xf32>
    %22 = vector.shape_cast %21 : vector<1x1x384xf32> to vector<1x384xf32>
    %c7 = arith.constant 7 : index
    %c0_23 = arith.constant 0 : index
    %23 = vector.load %arg7[%c7, %c0_23] : memref<9x384xf32, #tpu.memory_space<vmem>>, vector<1x384xf32>
    tpu.vector_store %arg7[%c7, %c0_23], %22 {strides = array<i32>} : memref<9x384xf32, #tpu.memory_space<vmem>>, vector<1x384xf32>,
    %c0_24 = arith.constant 0 : index
    %c0_25 = arith.constant 0 : index
    %c147 = arith.constant 147 : index
    %24 = vector.load %arg1[%c0_24, %c0_25, %c147] : memref<1x1x640xf32, #tpu.memory_space<vmem>>, vector<1x1x384xf32>
    %25 = vector.shape_cast %24 : vector<1x1x384xf32> to vector<1x384xf32>
    %c8 = arith.constant 8 : index
    %c0_26 = arith.constant 0 : index
    %26 = vector.load %arg7[%c8, %c0_26] : memref<9x384xf32, #tpu.memory_space<vmem>>, vector<1x384xf32>
    tpu.vector_store %arg7[%c8, %c0_26], %25 {strides = array<i32>} : memref<9x384xf32, #tpu.memory_space<vmem>>, vector<1x384xf32>,
    %c0_27 = arith.constant 0 : index
    %c0_28 = arith.constant 0 : index
    %27 = vector.load %arg3[%c0_27, %c0_28] : memref<16x10xf32, #tpu.memory_space<vmem>>, vector<16x9xf32>
    %c0_29 = arith.constant 0 : index
    %c9 = arith.constant 9 : index
    %28 = vector.load %arg3[%c0_29, %c9] : memref<16x10xf32, #tpu.memory_space<vmem>>, vector<16x1xf32>
    %c0_30 = arith.constant 0 : index
    %c0_31 = arith.constant 0 : index
    %29 = vector.load %arg7[%c0_30, %c0_31] : memref<9x384xf32, #tpu.memory_space<vmem>>, vector<9x384xf32>
    %cst = arith.constant dense<0.000000e+00> : vector<16x384xf32>
    %30 = tpu.matmul %27, %29, %cst {dimension_numbers = #tpu.dot_dimension_numbers<[1], [0], [0], [1], [0, 0, 1, 1], [], []>} : vector<16x9xf32>, vector<9x384xf32>, vector<16x384xf32> -> vector<16x384xf32>
    %31 = vector.broadcast %28 : vector<16x1xf32> to vector<16x384xf32>
    %32 = arith.addf %30, %31 : vector<16x384xf32>
    %cst_32 = arith.constant 0.000000e+00 : f32
    %33 = vector.broadcast %cst_32 : f32 to vector<16x384xf32>
    %34 = arith.maximumf %32, %33 : vector<16x384xf32>
    %c0_33 = arith.constant 0 : index
    %c0_34 = arith.constant 0 : index
    %35 = vector.load %arg2[%c0_33, %c0_34] : memref<1x384xf32, #tpu.memory_space<vmem>>, vector<1x384xf32>
    %36 = vector.broadcast %35 : vector<1x384xf32> to vector<16x384xf32>
    %37 = arith.mulf %34, %36 : vector<16x384xf32>
    %cst_35 = arith.constant 0.000000e+00 : f32
    %38 = vector.broadcast %cst_35 : f32 to vector<16x128xf32>
    %c0_36 = arith.constant 0 : index
    %c0_37 = arith.constant 0 : index
    %39 = vector.load %arg8[%c0_36, %c0_37] : memref<16x640xf32, #tpu.memory_space<vmem>>, vector<16x128xf32>
    tpu.vector_store %arg8[%c0_36, %c0_37], %38 {strides = array<i32>} : memref<16x640xf32, #tpu.memory_space<vmem>>, vector<16x128xf32>,
    %cst_38 = arith.constant 0.000000e+00 : f32
    %40 = vector.broadcast %cst_38 : f32 to vector<16x128xf32>
    %c0_39 = arith.constant 0 : index
    %c512 = arith.constant 512 : index
    %41 = vector.load %arg8[%c0_39, %c512] : memref<16x640xf32, #tpu.memory_space<vmem>>, vector<16x128xf32>
    tpu.vector_store %arg8[%c0_39, %c512], %40 {strides = array<i32>} : memref<16x640xf32, #tpu.memory_space<vmem>>, vector<16x128xf32>,
    %c0_40 = arith.constant 0 : index
    %c128_41 = arith.constant 128 : index
    %42 = vector.load %arg8[%c0_40, %c128_41] : memref<16x640xf32, #tpu.memory_space<vmem>>, vector<16x384xf32>
    tpu.vector_store %arg8[%c0_40, %c128_41], %37 {strides = array<i32>} : memref<16x640xf32, #tpu.memory_space<vmem>>, vector<16x384xf32>,
    %c0_42 = arith.constant 0 : index
    %c0_43 = arith.constant 0 : index
    %43 = vector.load %arg4[%c0_42, %c0_43] : memref<16x145xf32, #tpu.memory_space<vmem>>, vector<16x144xf32>
    %c0_44 = arith.constant 0 : index
    %c144 = arith.constant 144 : index
    %44 = vector.load %arg4[%c0_44, %c144] : memref<16x145xf32, #tpu.memory_space<vmem>>, vector<16x1xf32>
    %cst_45 = arith.constant 0.000000e+00 : f32
    %45 = vector.broadcast %cst_45 : f32 to vector<16x384xf32>
    %46 = vector.extract_strided_slice %43 {offsets = [0, 0], sizes = [16, 16], strides = [1, 1]} : vector<16x144xf32> to vector<16x16xf32>
    %c0_46 = arith.constant 0 : index
    %c109_47 = arith.constant 109 : index
    %47 = vector.load %arg8[%c0_46, %c109_47] : memref<16x640xf32, #tpu.memory_space<vmem>>, vector<16x384xf32>
    %cst_48 = arith.constant dense<0.000000e+00> : vector<16x384xf32>
    %48 = tpu.matmul %46, %47, %cst_48 {dimension_numbers = #tpu.dot_dimension_numbers<[1], [0], [0], [1], [0, 0, 1, 1], [], []>} : vector<16x16xf32>, vector<16x384xf32>, vector<16x384xf32> -> vector<16x384xf32>
    %49 = arith.addf %45, %48 : vector<16x384xf32>
    %50 = vector.extract_strided_slice %43 {offsets = [0, 16], sizes = [16, 16], strides = [1, 1]} : vector<16x144xf32> to vector<16x16xf32>
    %c0_49 = arith.constant 0 : index
    %c110_50 = arith.constant 110 : index
    %51 = vector.load %arg8[%c0_49, %c110_50] : memref<16x640xf32, #tpu.memory_space<vmem>>, vector<16x384xf32>
    %cst_51 = arith.constant dense<0.000000e+00> : vector<16x384xf32>
    %52 = tpu.matmul %50, %51, %cst_51 {dimension_numbers = #tpu.dot_dimension_numbers<[1], [0], [0], [1], [0, 0, 1, 1], [], []>} : vector<16x16xf32>, vector<16x384xf32>, vector<16x384xf32> -> vector<16x384xf32>
    %53 = arith.addf %49, %52 : vector<16x384xf32>
    %54 = vector.extract_strided_slice %43 {offsets = [0, 32], sizes = [16, 16], strides = [1, 1]} : vector<16x144xf32> to vector<16x16xf32>
    %c0_52 = arith.constant 0 : index
    %c111_53 = arith.constant 111 : index
    %55 = vector.load %arg8[%c0_52, %c111_53] : memref<16x640xf32, #tpu.memory_space<vmem>>, vector<16x384xf32>
    %cst_54 = arith.constant dense<0.000000e+00> : vector<16x384xf32>
    %56 = tpu.matmul %54, %55, %cst_54 {dimension_numbers = #tpu.dot_dimension_numbers<[1], [0], [0], [1], [0, 0, 1, 1], [], []>} : vector<16x16xf32>, vector<16x384xf32>, vector<16x384xf32> -> vector<16x384xf32>
    %57 = arith.addf %53, %56 : vector<16x384xf32>
    %58 = vector.extract_strided_slice %43 {offsets = [0, 48], sizes = [16, 16], strides = [1, 1]} : vector<16x144xf32> to vector<16x16xf32>
    %c0_55 = arith.constant 0 : index
    %c127_56 = arith.constant 127 : index
    %59 = vector.load %arg8[%c0_55, %c127_56] : memref<16x640xf32, #tpu.memory_space<vmem>>, vector<16x384xf32>
    %cst_57 = arith.constant dense<0.000000e+00> : vector<16x384xf32>
    %60 = tpu.matmul %58, %59, %cst_57 {dimension_numbers = #tpu.dot_dimension_numbers<[1], [0], [0], [1], [0, 0, 1, 1], [], []>} : vector<16x16xf32>, vector<16x384xf32>, vector<16x384xf32> -> vector<16x384xf32>
    %61 = arith.addf %57, %60 : vector<16x384xf32>
    %62 = vector.extract_strided_slice %43 {offsets = [0, 64], sizes = [16, 16], strides = [1, 1]} : vector<16x144xf32> to vector<16x16xf32>
    %c0_58 = arith.constant 0 : index
    %c128_59 = arith.constant 128 : index
    %63 = vector.load %arg8[%c0_58, %c128_59] : memref<16x640xf32, #tpu.memory_space<vmem>>, vector<16x384xf32>
    %cst_60 = arith.constant dense<0.000000e+00> : vector<16x384xf32>
    %64 = tpu.matmul %62, %63, %cst_60 {dimension_numbers = #tpu.dot_dimension_numbers<[1], [0], [0], [1], [0, 0, 1, 1], [], []>} : vector<16x16xf32>, vector<16x384xf32>, vector<16x384xf32> -> vector<16x384xf32>
    %65 = arith.addf %61, %64 : vector<16x384xf32>
    %66 = vector.extract_strided_slice %43 {offsets = [0, 80], sizes = [16, 16], strides = [1, 1]} : vector<16x144xf32> to vector<16x16xf32>
    %c0_61 = arith.constant 0 : index
    %c129_62 = arith.constant 129 : index
    %67 = vector.load %arg8[%c0_61, %c129_62] : memref<16x640xf32, #tpu.memory_space<vmem>>, vector<16x384xf32>
    %cst_63 = arith.constant dense<0.000000e+00> : vector<16x384xf32>
    %68 = tpu.matmul %66, %67, %cst_63 {dimension_numbers = #tpu.dot_dimension_numbers<[1], [0], [0], [1], [0, 0, 1, 1], [], []>} : vector<16x16xf32>, vector<16x384xf32>, vector<16x384xf32> -> vector<16x384xf32>
    %69 = arith.addf %65, %68 : vector<16x384xf32>
    %70 = vector.extract_strided_slice %43 {offsets = [0, 96], sizes = [16, 16], strides = [1, 1]} : vector<16x144xf32> to vector<16x16xf32>
    %c0_64 = arith.constant 0 : index
    %c145_65 = arith.constant 145 : index
    %71 = vector.load %arg8[%c0_64, %c145_65] : memref<16x640xf32, #tpu.memory_space<vmem>>, vector<16x384xf32>
    %cst_66 = arith.constant dense<0.000000e+00> : vector<16x384xf32>
    %72 = tpu.matmul %70, %71, %cst_66 {dimension_numbers = #tpu.dot_dimension_numbers<[1], [0], [0], [1], [0, 0, 1, 1], [], []>} : vector<16x16xf32>, vector<16x384xf32>, vector<16x384xf32> -> vector<16x384xf32>
    %73 = arith.addf %69, %72 : vector<16x384xf32>
    %74 = vector.extract_strided_slice %43 {offsets = [0, 112], sizes = [16, 16], strides = [1, 1]} : vector<16x144xf32> to vector<16x16xf32>
    %c0_67 = arith.constant 0 : index
    %c146_68 = arith.constant 146 : index
    %75 = vector.load %arg8[%c0_67, %c146_68] : memref<16x640xf32, #tpu.memory_space<vmem>>, vector<16x384xf32>
    %cst_69 = arith.constant dense<0.000000e+00> : vector<16x384xf32>
    %76 = tpu.matmul %74, %75, %cst_69 {dimension_numbers = #tpu.dot_dimension_numbers<[1], [0], [0], [1], [0, 0, 1, 1], [], []>} : vector<16x16xf32>, vector<16x384xf32>, vector<16x384xf32> -> vector<16x384xf32>
    %77 = arith.addf %73, %76 : vector<16x384xf32>
    %78 = vector.extract_strided_slice %43 {offsets = [0, 128], sizes = [16, 16], strides = [1, 1]} : vector<16x144xf32> to vector<16x16xf32>
    %c0_70 = arith.constant 0 : index
    %c147_71 = arith.constant 147 : index
    %79 = vector.load %arg8[%c0_70, %c147_71] : memref<16x640xf32, #tpu.memory_space<vmem>>, vector<16x384xf32>
    %cst_72 = arith.constant dense<0.000000e+00> : vector<16x384xf32>
    %80 = tpu.matmul %78, %79, %cst_72 {dimension_numbers = #tpu.dot_dimension_numbers<[1], [0], [0], [1], [0, 0, 1, 1], [], []>} : vector<16x16xf32>, vector<16x384xf32>, vector<16x384xf32> -> vector<16x384xf32>
    %81 = arith.addf %77, %80 : vector<16x384xf32>
    %82 = vector.broadcast %44 : vector<16x1xf32> to vector<16x384xf32>
    %83 = arith.addf %81, %82 : vector<16x384xf32>
    %cst_73 = arith.constant 0.000000e+00 : f32
    %84 = vector.broadcast %cst_73 : f32 to vector<16x384xf32>
    %85 = arith.maximumf %83, %84 : vector<16x384xf32>
    %c0_74 = arith.constant 0 : index
    %c0_75 = arith.constant 0 : index
    %86 = vector.load %arg5[%c0_74, %c0_75] : memref<8x17xf32, #tpu.memory_space<vmem>>, vector<8x16xf32>
    %c0_76 = arith.constant 0 : index
    %c16 = arith.constant 16 : index
    %87 = vector.load %arg5[%c0_76, %c16] : memref<8x17xf32, #tpu.memory_space<vmem>>, vector<8x1xf32>
    %cst_77 = arith.constant dense<0.000000e+00> : vector<8x384xf32>
    %88 = tpu.matmul %86, %85, %cst_77 {dimension_numbers = #tpu.dot_dimension_numbers<[1], [0], [0], [1], [0, 0, 1, 1], [], []>} : vector<8x16xf32>, vector<16x384xf32>, vector<8x384xf32> -> vector<8x384xf32>
    %89 = vector.broadcast %87 : vector<8x1xf32> to vector<8x384xf32>
    %90 = arith.addf %88, %89 : vector<8x384xf32>
    %91 = tpu.iota {dimensions = array<i32: 0>} : vector<8x384xi32>
    %c4_i32 = arith.constant 4 : i32
    %92 = vector.broadcast %c4_i32 : i32 to vector<8x384xi32>
    %93 = arith.cmpi slt, %91, %92 : vector<8x384xi32>
    %94 = arith.negf %90 : vector<8x384xf32>
    %95 = math.exp %94 : vector<8x384xf32>
    %cst_78 = arith.constant 1.000000e+00 : f32
    %96 = vector.broadcast %cst_78 : f32 to vector<8x384xf32>
    %97 = arith.addf %96, %95 : vector<8x384xf32>
    %98 = arith.divf %96, %97 : vector<8x384xf32>
    %99 = arith.select %93, %98, %90 : vector<8x384xi1>, vector<8x384xf32>
    %c0_79 = arith.constant 0 : index
    %c0_80 = arith.constant 0 : index
    %c0_81 = arith.constant 0 : index
    %100 = vector.load %arg6[%c0_79, %c0_80, %c0_81] : memref<1x8x384xf32, #tpu.memory_space<vmem>>, vector<1x8x384xf32>
    %101 = vector.shape_cast %100 : vector<1x8x384xf32> to vector<8x384xf32>
    %102 = vector.shape_cast %99 : vector<8x384xf32> to vector<1x8x384xf32>
    tpu.vector_store %arg6[%c0_79, %c0_80, %c0_81], %102 {strides = array<i32>} : memref<1x8x384xf32, #tpu.memory_space<vmem>>, vector<1x8x384xf32>,
    return
  }
  func.func @transform_0(%arg0: i32) -> (i32, i32, i32) {
    %c0_i32 = arith.constant 0 : i32
    %c0_i32_0 = arith.constant 0 : i32
    %c0_i32_1 = arith.constant 0 : i32
    return %arg0, %c0_i32, %c0_i32_0 : i32, i32, i32
  }
  func.func @transform_1(%arg0: i32) -> (i32, i32) {
    %c0_i32 = arith.constant 0 : i32
    %c0_i32_0 = arith.constant 0 : i32
    %c0_i32_1 = arith.constant 0 : i32
    return %c0_i32, %c0_i32_0 : i32, i32
  }
  func.func @transform_2(%arg0: i32) -> (i32, i32) {
    %c0_i32 = arith.constant 0 : i32
    %c0_i32_0 = arith.constant 0 : i32
    %c0_i32_1 = arith.constant 0 : i32
    return %c0_i32, %c0_i32_0 : i32, i32
  }
  func.func @transform_3(%arg0: i32) -> (i32, i32) {
    %c0_i32 = arith.constant 0 : i32
    %c0_i32_0 = arith.constant 0 : i32
    %c0_i32_1 = arith.constant 0 : i32
    return %c0_i32, %c0_i32_0 : i32, i32
  }
  func.func @transform_4(%arg0: i32) -> (i32, i32) {
    %c0_i32 = arith.constant 0 : i32
    %c0_i32_0 = arith.constant 0 : i32
    %c0_i32_1 = arith.constant 0 : i32
    return %c0_i32, %c0_i32_0 : i32, i32
  }
  func.func @transform_5(%arg0: i32) -> (i32, i32, i32) {
    %c0_i32 = arith.constant 0 : i32
    %c0_i32_0 = arith.constant 0 : i32
    %c0_i32_1 = arith.constant 0 : i32
    return %arg0, %c0_i32, %c0_i32_0 : i32, i32, i32
  }
}

</mosaic_0001>

<llo_original>
// kernel: tpu_custom_call.1
$region0: #{tpu_custom_call.1}
  #allocation0 [shape = 'u32[]', space=smem, size = 0x4, offset = 0x4, fixed_abs, tag = 'smem constant byte address 0x4 - core index']
  #allocation1 [shape = 'u32[144,128]{1,0:T(1,128)}', space=vmem, size = 0x12000, scoped, tag = 'internal scratch']
  #allocation2 [shape = 'f32[9,384]{1,0:T(8,128)}', space=vmem, size = 0x6000, scoped, tag = 'scratch operand']
  #allocation3 [shape = 'f32[16,640]{1,0:T(8,128)}', space=vmem, size = 0xa000, scoped, tag = 'scratch operand']
  %s0 = inlined_call_operand.hbm [shape: f32[2,1,640], index: 0, kind: input, shape index: {}]
  %s1 = inlined_call_operand.vmem [shape: f32[1,384], index: 1, kind: input, shape index: {}]
  %s2 = inlined_call_operand.hbm [shape: f32[16,10], index: 2, kind: input, shape index: {}]
  %s3 = inlined_call_operand.hbm [shape: f32[16,145], index: 3, kind: input, shape index: {}]
  %s4 = inlined_call_operand.vmem [shape: f32[8,17], index: 4, kind: input, shape index: {}]
  %s5 = inlined_call_operand.hbm [shape: f32[2,8,384], index: 5, kind: output, shape index: {}]
  %s6 = sld [smem:[#allocation0]]
  $region65: #{tpu_custom_call.1} parent=0
    _
  %s8 = ssub.s32 1, %s6
  %s9 = scalar_select 0, %s8, %s6
  $region1: #{tpu_custom_call.1} parent=0
    #allocation4 [shape = 'u8[5120]{0}', space=vmem, size = 0x1400, scoped, tag = 'input window, operand 0']
    #allocation5 [shape = 's32[2]{0}', space=sflag, size = 0x8, scoped, tag = 'scoped memory for tpu_custom_call.1']
    #allocation6 [shape = 's32[2]{0}', space=sflag, size = 0x8, scoped, tag = 'scoped memory for tpu_custom_call.1']
    #allocation7 [shape = 'u8[8192]{0}', space=vmem, size = 0x2000, scoped, tag = 'input window, operand 2, single buffered']
    #allocation8 [shape = 's32[1]{0}', space=sflag, size = 0x4, scoped, tag = 'scoped memory for tpu_custom_call.1']
    #allocation9 [shape = 'u8[16384]{0}', space=vmem, size = 0x4000, scoped, tag = 'input window, operand 3, single buffered']
    #allocation10 [shape = 'u8[24576]{0}', space=vmem, size = 0x6000, scoped, tag = 'output window, operand 0']
    %10 = vsyncpa [#allocation5], 0
    %s11 = scalar_lea.sflag [#allocation5], 1
    %12 = vsyncpa %s11, 0
    %13 = vsyncpa [#allocation8], 0
    %14 = vsyncpa [#allocation6], 0
    %s15 = scalar_lea.sflag [#allocation6], 1
    %16 = vsyncpa %s15, 0
    loop: start=0, step=1, limit=4
    $region2: #{tpu_custom_call.1} parent=1 // loop_pre_header
      _
    $region3: #{tpu_custom_call.1} parent=1 // loop_header
      %s18 = sphi 0, %s22
      %p19 = scmp.ge.s32.totalorder %s18, 4
      %s28 = sphi 0, %s30
      %s31 = sphi 0, %s28
      %s32 = sphi 0, %s31
      %s48 = sphi 0, %s32
      %s52 = sphi 0, %s52
      %s54 = sphi 0, %s52
      %s55 = sphi 0, %s54
      %s69 = sphi 0, %s55
      %s73 = sphi 0, %s73
      %s75 = sphi 0, %s73
      %s76 = sphi 0, %s75
      %s90 = sphi 0, %s76
      %s94 = sphi 0, %s94
      %s96 = sphi 0, %s94
      %s97 = sphi 0, %s96
      %s111 = sphi 0, %s97
      %s115 = sphi 0, %s115
      %s117 = sphi 0, %s115
      %s118 = sphi 0, %s117
      %s132 = sphi 0, %s118
      %s138 = sphi 0, %s140
      %s141 = sphi 0, %s138
      %s142 = sphi 0, %s141
      %s158 = sphi 0, %s142
    $region4: #{tpu_custom_call.1} parent=1 // loop_header_branch
      %21 = sbr.rel (%p19) target = $region8
    $region5: #{tpu_custom_call.1} parent=1 // loop_body
      %s23 = ssub.s32 %s18, 1
      %s24 = ssub.s32 %s18, 2
      %s25 = sadd.s32 %s18, 1
      %s26 = ssub.s32 %s18, %s25
      %p27 = scmp.eq.s32.totalorder %s26, 0
      %s29 = sadd.s32 %s28, 1
      %s30 = scalar_select %p27, %s28, %s29
      %p33 = pneg %p27
      %p34 = scmp.eq.s32.totalorder %s18, 1
      %p35 = por %p33, %p34
      %p36 = scmp.ne.s32.totalorder %s28, %s31
      %p37 = scmp.eq.s32.totalorder %s18, 0
      %p38 = por %p36, %p37
      %p39 = scmp.ne.s32.totalorder %s28, %s31
      %p40 = scmp.eq.s32.totalorder %s23, 1
      %p41 = por %p39, %p40
      %p42 = scmp.ne.s32.totalorder %s31, %s32
      %p43 = scmp.eq.s32.totalorder %s23, 0
      %p44 = por %p42, %p43
      %p45 = scmp.ne.s32.totalorder %s31, %s32
      %p46 = scmp.eq.s32.totalorder %s24, 1
      %p47 = por %p45, %p46
      %p49 = scmp.ne.s32.totalorder %s32, %s48
      %p50 = scmp.eq.s32.totalorder %s24, 0
      %p51 = por %p49, %p50
      %s53 = sadd.s32 %s52, 1
      %p56 = scmp.eq.s32.totalorder %s18, 1
      %p57 = scmp.ne.s32.totalorder %s52, %s54
      %p58 = scmp.eq.s32.totalorder %s18, 0
      %p59 = por %p57, %p58
      %p60 = scmp.ne.s32.totalorder %s52, %s54
      %p61 = scmp.eq.s32.totalorder %s23, 1
      %p62 = por %p60, %p61
      %p63 = scmp.ne.s32.totalorder %s54, %s55
      %p64 = scmp.eq.s32.totalorder %s23, 0
      %p65 = por %p63, %p64
      %p66 = scmp.ne.s32.totalorder %s54, %s55
      %p67 = scmp.eq.s32.totalorder %s24, 1
      %p68 = por %p66, %p67
      %p70 = scmp.ne.s32.totalorder %s55, %s69
      %p71 = scmp.eq.s32.totalorder %s24, 0
      %p72 = por %p70, %p71
      %s74 = sadd.s32 %s73, 1
      %p77 = scmp.eq.s32.totalorder %s18, 1
      %p78 = scmp.ne.s32.totalorder %s73, %s75
      %p79 = scmp.eq.s32.totalorder %s18, 0
      %p80 = por %p78, %p79
      %p81 = scmp.ne.s32.totalorder %s73, %s75
      %p82 = scmp.eq.s32.totalorder %s23, 1
      %p83 = por %p81, %p82
      %p84 = scmp.ne.s32.totalorder %s75, %s76
      %p85 = scmp.eq.s32.totalorder %s23, 0
      %p86 = por %p84, %p85
      %p87 = scmp.ne.s32.totalorder %s75, %s76
      %p88 = scmp.eq.s32.totalorder %s24, 1
      %p89 = por %p87, %p88
      %p91 = scmp.ne.s32.totalorder %s76, %s90
      %p92 = scmp.eq.s32.totalorder %s24, 0
      %p93 = por %p91, %p92
      %s95 = sadd.s32 %s94, 1
      %p98 = scmp.eq.s32.totalorder %s18, 1
      %p99 = scmp.ne.s32.totalorder %s94, %s96
      %p100 = scmp.eq.s32.totalorder %s18, 0
      %p101 = por %p99, %p100
      %p102 = scmp.ne.s32.totalorder %s94, %s96
      %p103 = scmp.eq.s32.totalorder %s23, 1
      %p104 = por %p102, %p103
      %p105 = scmp.ne.s32.totalorder %s96, %s97
      %p106 = scmp.eq.s32.totalorder %s23, 0
      %p107 = por %p105, %p106
      %p108 = scmp.ne.s32.totalorder %s96, %s97
      %p109 = scmp.eq.s32.totalorder %s24, 1
      %p110 = por %p108, %p109
      %p112 = scmp.ne.s32.totalorder %s97, %s111
      %p113 = scmp.eq.s32.totalorder %s24, 0
      %p114 = por %p112, %p113
      %s116 = sadd.s32 %s115, 1
      %p119 = scmp.eq.s32.totalorder %s18, 1
      %p120 = scmp.ne.s32.totalorder %s115, %s117
      %p121 = scmp.eq.s32.totalorder %s18, 0
      %p122 = por %p120, %p121
      %p123 = scmp.ne.s32.totalorder %s115, %s117
      %p124 = scmp.eq.s32.totalorder %s23, 1
      %p125 = por %p123, %p124
      %p126 = scmp.ne.s32.totalorder %s117, %s118
      %p127 = scmp.eq.s32.totalorder %s23, 0
      %p128 = por %p126, %p127
      %p129 = scmp.ne.s32.totalorder %s117, %s118
      %p130 = scmp.eq.s32.totalorder %s24, 1
      %p131 = por %p129, %p130
      %p133 = scmp.ne.s32.totalorder %s118, %s132
      %p134 = scmp.eq.s32.totalorder %s24, 0
      %p135 = por %p133, %p134
      %s136 = ssub.s32 %s18, %s25
      %p137 = scmp.eq.s32.totalorder %s136, 0
      %s139 = sadd.s32 %s138, 1
      %s140 = scalar_select %p137, %s138, %s139
      %p143 = pneg %p137
      %p144 = scmp.eq.s32.totalorder %s18, 1
      %p145 = por %p143, %p144
      %p146 = scmp.ne.s32.totalorder %s138, %s141
      %p147 = scmp.eq.s32.totalorder %s18, 0
      %p148 = por %p146, %p147
      %p149 = scmp.ne.s32.totalorder %s138, %s141
      %p150 = scmp.eq.s32.totalorder %s23, 1
      %p151 = por %p149, %p150
      %p152 = scmp.ne.s32.totalorder %s141, %s142
      %p153 = scmp.eq.s32.totalorder %s23, 0
      %p154 = por %p152, %p153
      %p155 = scmp.ne.s32.totalorder %s141, %s142
      %p156 = scmp.eq.s32.totalorder %s24, 1
      %p157 = por %p155, %p156
      %p159 = scmp.ne.s32.totalorder %s142, %s158
      %p160 = scmp.eq.s32.totalorder %s24, 0
      %p161 = por %p159, %p160
      %p162 = scmp.le.s32.totalorder 1, %s18
      %p163 = scmp.lt.s32.totalorder %s18, 3
      %p164 = pnand %p162, %p163
      %p165 = pneg %p164
      // Predicated region
      $region9: #{tpu_custom_call.1} parent=5 // pred_check
        _
      $region10: #{tpu_custom_call.1} parent=5 // pred_check_branch
        %167 = sbr.rel (%p164) target = $region12
      $region11: #{tpu_custom_call.1} parent=5 // pred_region
        %s168 = ssub.s32 %s18, 1
        // Predicated region
        $region13: #{tpu_custom_call.1} parent=11 // pred_check
          %p169 = pneg %p65
        $region14: #{tpu_custom_call.1} parent=11 // pred_check_branch
          %171 = sbr.rel (%p169) target = $region16
        $region15: #{tpu_custom_call.1} parent=11 // pred_region
          _
        $region16: #{tpu_custom_call.1} parent=11 // pred_fallthru
          _
        // Predicated region
        $region17: #{tpu_custom_call.1} parent=11 // pred_check
          %p172 = pneg %p86
        $region18: #{tpu_custom_call.1} parent=11 // pred_check_branch
          %174 = sbr.rel (%p172) target = $region20
        $region19: #{tpu_custom_call.1} parent=11 // pred_region
          %s176 = ssub.s32 256, 256
          %177 = vsyncadd [#allocation8], %s176
          %s178 = sshll.u32 [#allocation7], 4
          %s179 = int_to_ptr.vmem [resolvable:$true] %s178
          %184 = dma.hbm_to_vmem [thread:$0]  %s2, 256, %s179, [#allocation8], 128, 128, 8
        $region20: #{tpu_custom_call.1} parent=11 // pred_fallthru
          _
        // Predicated region
        $region21: #{tpu_custom_call.1} parent=11 // pred_check
          %p185 = pneg %p107
        $region22: #{tpu_custom_call.1} parent=11 // pred_check_branch
          %187 = sbr.rel (%p185) target = $region24
        $region23: #{tpu_custom_call.1} parent=11 // pred_region
          %s189 = ssub.s32 512, 512
          %190 = vsyncadd [#allocation8], %s189
          %s191 = sshll.u32 [#allocation9], 4
          %s192 = int_to_ptr.vmem [resolvable:$true] %s191
          %197 = dma.hbm_to_vmem [thread:$0]  %s3, 512, %s192, [#allocation8], 256, 256, 16
        $region24: #{tpu_custom_call.1} parent=11 // pred_fallthru
          _
        // Predicated region
        $region25: #{tpu_custom_call.1} parent=11 // pred_check
          %p198 = pneg %p128
        $region26: #{tpu_custom_call.1} parent=11 // pred_check_branch
          %200 = sbr.rel (%p198) target = $region28
        $region27: #{tpu_custom_call.1} parent=11 // pred_region
          _
        $region28: #{tpu_custom_call.1} parent=11 // pred_fallthru
          _
      $region12: #{tpu_custom_call.1} parent=5 // pred_fallthru
        _
      %p201 = scmp.lt.s32.totalorder %s18, 2
      // Predicated region
      $region29: #{tpu_custom_call.1} parent=5 // pred_check
        %p202 = pneg %p201
      $region30: #{tpu_custom_call.1} parent=5 // pred_check_branch
        %204 = sbr.rel (%p202) target = $region32
      $region31: #{tpu_custom_call.1} parent=5 // pred_region
        // Predicated region
        $region33: #{tpu_custom_call.1} parent=31 // pred_check
          %p205 = pneg %p38
        $region34: #{tpu_custom_call.1} parent=31 // pred_check_branch
          %207 = sbr.rel (%p205) target = $region36
        $region35: #{tpu_custom_call.1} parent=31 // pred_region
          %s208 = sand.u32 %s28, 1
          %s209 = scalar_lea.sflag [#allocation5], %s208
          %s210 = sand.u32 %s28, 1
          %s211 = smul.addr %s210, 5
          %s212 = scalar_lea.vmem [#allocation4], %s211
          %s214 = ssub.s32 80, 80
          %215 = vsyncadd %s209, %s214
          %s216 = smul.addr %s18, 5
          %s217 = smul.addr %s216, 16
          %s218 = scalar_lea.hbm %s0, %s217
          %s220 = sshll.u32 %s212, 4
          %s221 = int_to_ptr.vmem [resolvable:$true] %s220
          %223 = dma.hbm_to_vmem [thread:$0]  %s218, 80, %s221, %s209
        $region36: #{tpu_custom_call.1} parent=31 // pred_fallthru
          _
      $region32: #{tpu_custom_call.1} parent=5 // pred_fallthru
        _
      %p224 = scmp.le.s32.totalorder 1, %s18
      %p225 = scmp.lt.s32.totalorder %s18, 3
      %p226 = pnand %p224, %p225
      %p227 = pneg %p226
      // Predicated region
      $region37: #{tpu_custom_call.1} parent=5 // pred_check
        _
      $region38: #{tpu_custom_call.1} parent=5 // pred_check_branch
        %229 = sbr.rel (%p226) target = $region40
      $region39: #{tpu_custom_call.1} parent=5 // pred_region
        %s230 = ssub.s32 %s18, 1
        %s231 = sand.u32 %s31, 1
        %s232 = scalar_lea.sflag [#allocation5], %s231
        %s233 = sand.u32 %s31, 1
        %s234 = smul.addr %s233, 5
        %s235 = scalar_lea.vmem [#allocation4], %s234
        // Predicated region
        $region41: #{tpu_custom_call.1} parent=39 // pred_check
          %p236 = pneg %p44
        $region42: #{tpu_custom_call.1} parent=39 // pred_check_branch
          %238 = sbr.rel (%p236) target = $region44
        $region43: #{tpu_custom_call.1} parent=39 // pred_region
          %239 = dma.done %s232, 80
        $region44: #{tpu_custom_call.1} parent=39 // pred_fallthru
          _
        // Predicated region
        $region45: #{tpu_custom_call.1} parent=39 // pred_check
          %p240 = pneg %p86
        $region46: #{tpu_custom_call.1} parent=39 // pred_check_branch
          %242 = sbr.rel (%p240) target = $region48
        $region47: #{tpu_custom_call.1} parent=39 // pred_region
          %243 = dma.done [#allocation8], 256
        $region48: #{tpu_custom_call.1} parent=39 // pred_fallthru
          _
        // Predicated region
        $region49: #{tpu_custom_call.1} parent=39 // pred_check
          %p244 = pneg %p107
        $region50: #{tpu_custom_call.1} parent=39 // pred_check_branch
          %246 = sbr.rel (%p244) target = $region52
        $region51: #{tpu_custom_call.1} parent=39 // pred_region
          %247 = dma.done [#allocation8], 512
        $region52: #{tpu_custom_call.1} parent=39 // pred_fallthru
          _
        %s248 = sand.u32 %s31, 1
        %s249 = scalar_lea.sflag [#allocation5], %s248
        %s250 = sand.u32 %s31, 1
        %s251 = smul.addr %s250, 5
        %s252 = scalar_lea.vmem [#allocation4], %s251
        %p253 = pneg %p44
        %p254 = pneg %p41
        %p255 = pneg %p65
        %p256 = pneg %p62
        %p257 = pneg %p86
        %p258 = pneg %p83
        %p259 = pneg %p107
        %p260 = pneg %p104
        %p261 = pneg %p128
        %p262 = pneg %p125
        %p263 = pneg %p154
        %p264 = pneg %p151
        %s265 = sand.u32 %s141, 1
        %s266 = scalar_lea.sflag [#allocation6], %s265
        %s267 = sand.u32 %s141, 1
        %s268 = smul.addr %s267, 24
        %s269 = scalar_lea.vmem [#allocation10], %s268
        %v270 = vld [vmem:[%s235] sm:$0xf]
        %272 = vrot.lane.b32.xlu0 %v270, 19
        %v273 = vpop.permute.xlu0 %272
        %v274 = vrot.slane %v273, 1
        %vm275 = vcmask 154624
        %v276 = vsel %vm275, %v273, %v274
        %v278 = vlaneseq
        %vm279 = vcmp.ge.s32.totalorder %v278, 0
        %vm280 = vcmp.lt.s32.totalorder %v278, 384
        %vm281 = vmand %vm279, %vm280
        %282 = vst.msk [vmem:[#allocation2] ss:$8 sm:$0x7] %vm281, %v276
        %283 = vst.msk [vmem:[#allocation2] ss:$8 sm:$0x0] %vm281, %v276
        %v284 = vld [vmem:[%s235] sm:$0xf]
        %286 = vrot.lane.b32.xlu0 %v284, 18
        %v287 = vpop.permute.xlu0 %286
        %v288 = vrot.slane %v287, 1
        %vm289 = vcmask 146432
        %v290 = vsel %vm289, %v287, %v288
        %s292 = scalar_lea.vmem [#allocation2], 1
        %293 = vst.msk [vmem:[%s292] ss:$8 sm:$0x7] %vm281, %v290
        %294 = vst.msk [vmem:[%s292] ss:$8 sm:$0x0] %vm281, %v290
        %v295 = vld [vmem:[%s235] sm:$0xf]
        %297 = vrot.lane.b32.xlu0 %v295, 17
        %v298 = vpop.permute.xlu0 %297
        %v299 = vrot.slane %v298, 1
        %vm300 = vcmask 138240
        %v301 = vsel %vm300, %v298, %v299
        %s303 = scalar_lea.vmem [#allocation2], 2
        %304 = vst.msk [vmem:[%s303] ss:$8 sm:$0x7] %vm281, %v301
        %305 = vst.msk [vmem:[%s303] ss:$8 sm:$0x0] %vm281, %v301
        %v306 = vld [vmem:[%s235] sm:$0xf]
        %308 = vrot.lane.b32.xlu0 %v306, 1
        %v309 = vpop.permute.xlu0 %308
        %v310 = vrot.slane %v309, 1
        %vm311 = vcmask 7168
        %v312 = vsel %vm311, %v309, %v310
        %s314 = scalar_lea.vmem [#allocation2], 3
        %315 = vst.msk [vmem:[%s314] ss:$8 sm:$0x7] %vm281, %v312
        %316 = vst.msk [vmem:[%s314] ss:$8 sm:$0x0] %vm281, %v312
        %v317 = vld [vmem:[%s235 + $0x1] sm:$0x7]
        %s318 = scalar_lea.vmem [#allocation2], 4
        %319 = vst.msk [vmem:[%s318] ss:$8 sm:$0x7] %vm281, %v317
        %320 = vst.msk [vmem:[%s318] ss:$8 sm:$0x0] %vm281, %v317
        %v321 = vld [vmem:[%s235 + $0x1] sm:$0xf]
        %323 = vrot.lane.b32.xlu0 %v321, 127
        %v324 = vpop.permute.xlu0 %323
        %v325 = vrot.slane %v324, 1
        %vm326 = vcmask 1039360
        %v327 = vsel %vm326, %v324, %v325
        %s329 = scalar_lea.vmem [#allocation2], 5
        %330 = vst.msk [vmem:[%s329] ss:$8 sm:$0x7] %vm281, %v327
        %331 = vst.msk [vmem:[%s329] ss:$8 sm:$0x0] %vm281, %v327
        %v332 = vld [vmem:[%s235 + $0x1] sm:$0xf]
        %334 = vrot.lane.b32.xlu0 %v332, 111
        %v335 = vpop.permute.xlu0 %334
        %v336 = vrot.slane %v335, 1
        %vm337 = vcmask 908288
        %v338 = vsel %vm337, %v335, %v336
        %s340 = scalar_lea.vmem [#allocation2], 6
        %341 = vst.msk [vmem:[%s340] ss:$8 sm:$0x7] %vm281, %v338
        %342 = vst.msk [vmem:[%s340] ss:$8 sm:$0x0] %vm281, %v338
        %v343 = vld [vmem:[%s235 + $0x1] sm:$0xf]
        %345 = vrot.lane.b32.xlu0 %v343, 110
        %v346 = vpop.permute.xlu0 %345
        %v347 = vrot.slane %v346, 1
        %vm348 = vcmask 900096
        %v349 = vsel %vm348, %v346, %v347
        %s351 = scalar_lea.vmem [#allocation2], 7
        %352 = vst.msk [vmem:[%s351] ss:$8 sm:$0x7] %vm281, %v349
        %353 = vst.msk [vmem:[%s351] ss:$8 sm:$0x0] %vm281, %v349
        %v354 = vld [vmem:[%s235 + $0x1] sm:$0xf]
        %356 = vrot.lane.b32.xlu0 %v354, 109
        %v357 = vpop.permute.xlu0 %356
        %v358 = vrot.slane %v357, 1
        %vm359 = vcmask 891904
        %v360 = vsel %vm359, %v357, %v358
        %s362 = scalar_lea.vmem [#allocation2], 24
        %363 = vst.msk [vmem:[%s362] ss:$8 sm:$0x7] %vm281, %v360
        %364 = vst.msk [vmem:[%s362] ss:$8 sm:$0x0] %vm281, %v360
        %v365 = vld [vmem:[#allocation7] sm:$0xff]
        %v366 = vld [vmem:[#allocation7 + $0x8] sm:$0xff]
        %v367 = vld [vmem:[#allocation2] sm:$0xff]
        %v368 = vld [vmem:[#allocation2 + $0x8] sm:$0xff]
        %v369 = vld [vmem:[#allocation2 + $0x10] sm:$0xff]
        %v370 = vld [vmem:[#allocation2 + $0x18] sm:$0x1]
        %v371 = vld [vmem:[#allocation2 + $0x20] sm:$0x1]
        %v372 = vld [vmem:[#allocation2 + $0x28] sm:$0x1]
        %374 = vset.pattern.permute.xlu0 9
        %375 = vperm.xlu0 %374, %v365
        %v376 = vpop.permute.xlu0 %375
        %379 = vset.pattern.permute.xlu0 9
        %380 = vperm.xlu0 %379, %v366
        %v381 = vpop.permute.xlu0 %380
        %vm383 = vcmask 72704
        %v384 = vsel %vm383, %v365, 0
        %v386 = vsel %vm383, %v366, 0
        %vm388 = vcmask 1040384
        %v390 = vsel %vm388, %v370, 0
        %v393 = vsel %vm388, %v371, 0
        %v396 = vsel %vm388, %v372, 0
        %398 = vmatprep.subr.mxu0 %v368
        %399 = vmatpush1.msra.mxu0 %v367
        %400 = vmatprep.subr.mxu0 %v393
        %401 = vmatpush1.msra.mxu0 %v390
        %402 = vmatprep.subr.mxu0 0.0
        %403 = vmatpush1.msra.mxu0 0.0
        %404 = vmatprep.subr.mxu0 0.0
        %405 = vmatpush1.msra.mxu0 0.0
        %406 = vmatprep.subr.mxu0 0.0
        %407 = vmatpush1.msra.mxu0 0.0
        %408 = vmatprep.subr.mxu0 0.0
        %409 = vmatpush1.msra.mxu0 0.0
        %410 = vmatprep.subr.mxu0 0.0
        %411 = vmatpush1.msra.mxu0 0.0
        %412 = vmatprep.subr.mxu0 0.0
        %413 = vmatpush1.msra.mxu0 0.0
        %414 = vmatprep.subr.mxu0 0.0
        %415 = vmatpush1.msra.mxu0 0.0
        %416 = vmatprep.subr.mxu0 0.0
        %417 = vmatpush1.msra.mxu0 0.0
        %418 = vmatprep.subr.mxu0 0.0
        %419 = vmatpush1.msra.mxu0 0.0
        %420 = vmatprep.subr.mxu0 0.0
        %421 = vmatpush1.msra.mxu0 0.0
        %422 = vmatprep.subr.mxu0 0.0
        %423 = vmatpush1.msra.mxu0 0.0
        %424 = vmatprep.subr.mxu0 0.0
        %425 = vmatpush1.msra.mxu0 0.0
        %426 = vmatprep.subr.mxu0 0.0
        %427 = vmatpush1.msra.mxu0 0.0
        %428 = vmatprep.subr.mxu0 0.0
        %429 = vmatpush1.msra.mxu0 0.0
        %430 = vmatprep.subr.mxu0 0.0
        %431 = vmatpush1.msra.mxu0 0.0
        %432 = vmatprep.subr.mxu0 0.0
        %433 = vmatpush1.msra.mxu0 0.0
        %434 = vmatprep.subr.mxu0 0.0
        %435 = vmatpush1.msra.mxu0 0.0
        %436 = vmatprep.subr.mxu0 0.0
        %437 = vmatpush1.msra.mxu0 0.0
        %438 = vmatprep.subr.mxu0 0.0
        %439 = vmatpush1.msra.mxu0 0.0
        %440 = vmatprep.subr.mxu0 0.0
        %441 = vmatpush1.msra.mxu0 0.0
        %442 = vmatprep.subr.mxu0 0.0
        %443 = vmatpush1.msra.mxu0 0.0
        %444 = vmatprep.subr.mxu0 0.0
        %445 = vmatpush1.msra.mxu0 0.0
        %446 = vmatprep.subr.mxu0 0.0
        %447 = vmatpush1.msra.mxu0 0.0
        %448 = vmatprep.subr.mxu0 0.0
        %449 = vmatpush1.msra.mxu0 0.0
        %450 = vmatprep.subr.mxu0 0.0
        %451 = vmatpush1.msra.mxu0 0.0
        %452 = vmatprep.subr.mxu0 0.0
        %453 = vmatpush1.msra.mxu0 0.0
        %454 = vmatprep.subr.mxu0 0.0
        %455 = vmatpush1.msra.mxu0 0.0
        %456 = vmatprep.subr.mxu0 0.0
        %457 = vmatpush1.msra.mxu0 0.0
        %458 = vmatprep.subr.mxu0 0.0
        %459 = vmatpush1.msra.mxu0 0.0
        %460 = vmatprep.subr.mxu0 0.0
        %461 = vmatpush1.msra.mxu0 0.0
        %462 = vmatprep.mubr.f32.mxu0 0.0
        %463 = vmatmul.mubr.f32.gmra.mrb[0].mxu0 %v384
        %v464 = vpop.f32.mrb[0].mxu0
        %v465 = vadd.f32 %v376, %v464
        %v466 = vpop.f32.mrb[0].mxu0
        %v467 = vadd.f32 %v376, %v466
        %468 = vmatprep.mubr.f32.mxu0 0.0
        %469 = vmatmul.mubr.f32.gmra.mrb[0].mxu0 %v386
        %v470 = vpop.f32.mrb[0].mxu0
        %v471 = vadd.f32 %v381, %v470
        %v472 = vpop.f32.mrb[0].mxu0
        %v473 = vadd.f32 %v381, %v472
        %474 = vdwg.mxu0
        %475 = vmatprep.subr.mxu0 0.0
        %476 = vmatpush1.msra.mxu0 %v369
        %477 = vmatprep.subr.mxu0 0.0
        %478 = vmatpush1.msra.mxu0 %v396
        %479 = vmatprep.subr.mxu0 0.0
        %480 = vmatpush1.msra.mxu0 0.0
        %481 = vmatprep.subr.mxu0 0.0
        %482 = vmatpush1.msra.mxu0 0.0
        %483 = vmatprep.subr.mxu0 0.0
        %484 = vmatpush1.msra.mxu0 0.0
        %485 = vmatprep.subr.mxu0 0.0
        %486 = vmatpush1.msra.mxu0 0.0
        %487 = vmatprep.subr.mxu0 0.0
        %488 = vmatpush1.msra.mxu0 0.0
        %489 = vmatprep.subr.mxu0 0.0
        %490 = vmatpush1.msra.mxu0 0.0
        %491 = vmatprep.subr.mxu0 0.0
        %492 = vmatpush1.msra.mxu0 0.0
        %493 = vmatprep.subr.mxu0 0.0
        %494 = vmatpush1.msra.mxu0 0.0
        %495 = vmatprep.subr.mxu0 0.0
        %496 = vmatpush1.msra.mxu0 0.0
        %497 = vmatprep.subr.mxu0 0.0
        %498 = vmatpush1.msra.mxu0 0.0
        %499 = vmatprep.subr.mxu0 0.0
        %500 = vmatpush1.msra.mxu0 0.0
        %501 = vmatprep.subr.mxu0 0.0
        %502 = vmatpush1.msra.mxu0 0.0
        %503 = vmatprep.subr.mxu0 0.0
        %504 = vmatpush1.msra.mxu0 0.0
        %505 = vmatprep.subr.mxu0 0.0
        %506 = vmatpush1.msra.mxu0 0.0
        %507 = vmatprep.subr.mxu0 0.0
        %508 = vmatpush1.msra.mxu0 0.0
        %509 = vmatprep.subr.mxu0 0.0
        %510 = vmatpush1.msra.mxu0 0.0
        %511 = vmatprep.subr.mxu0 0.0
        %512 = vmatpush1.msra.mxu0 0.0
        %513 = vmatprep.subr.mxu0 0.0
        %514 = vmatpush1.msra.mxu0 0.0
        %515 = vmatprep.subr.mxu0 0.0
        %516 = vmatpush1.msra.mxu0 0.0
        %517 = vmatprep.subr.mxu0 0.0
        %518 = vmatpush1.msra.mxu0 0.0
        %519 = vmatprep.subr.mxu0 0.0
        %520 = vmatpush1.msra.mxu0 0.0
        %521 = vmatprep.subr.mxu0 0.0
        %522 = vmatpush1.msra.mxu0 0.0
        %523 = vmatprep.subr.mxu0 0.0
        %524 = vmatpush1.msra.mxu0 0.0
        %525 = vmatprep.subr.mxu0 0.0
        %526 = vmatpush1.msra.mxu0 0.0
        %527 = vmatprep.subr.mxu0 0.0
        %528 = vmatpush1.msra.mxu0 0.0
        %529 = vmatprep.subr.mxu0 0.0
        %530 = vmatpush1.msra.mxu0 0.0
        %531 = vmatprep.subr.mxu0 0.0
        %532 = vmatpush1.msra.mxu0 0.0
        %533 = vmatprep.subr.mxu0 0.0
        %534 = vmatpush1.msra.mxu0 0.0
        %535 = vmatprep.subr.mxu0 0.0
        %536 = vmatpush1.msra.mxu0 0.0
        %537 = vmatprep.subr.mxu0 0.0
        %538 = vmatpush1.msra.mxu0 0.0
        %539 = vmatprep.mubr.f32.mxu0 0.0
        %540 = vmatmul.mubr.f32.gmra.mrb[0].mxu0 %v384
        %v541 = vpop.f32.mrb[0].mxu0
        %v542 = vadd.f32 %v376, %v541
        %v543 = vpop.f32.mrb[0].mxu0
        %544 = vmatprep.mubr.f32.mxu0 0.0
        %545 = vmatmul.mubr.f32.gmra.mrb[0].mxu0 %v386
        %v546 = vpop.f32.mrb[0].mxu0
        %v547 = vadd.f32 %v381, %v546
        %v548 = vpop.f32.mrb[0].mxu0
        %549 = vdwg.mxu0
        %v550 = vmax.f32 %v465, 0.0
        %v551 = vmax.f32 %v467, 0.0
        %v552 = vmax.f32 %v542, 0.0
        %v553 = vmax.f32 %v471, 0.0
        %v554 = vmax.f32 %v473, 0.0
        %v555 = vmax.f32 %v547, 0.0
        %v556 = vld [vmem:[%s1] sm:$0x7]
        %v558 = vlaneseq
        %v559 = vshrl.u32 %v558, 7
        %v560 = vsub.s32 0, %v559
        %v561 = vrot.slane %v556, %v560
        %v562 = vlaneseq
        %v563 = vshrl.u32 %v562, 7
        %v564 = vsub.s32 1, %v563
        %v565 = vrot.slane %v556, %v564
        %v566 = vlaneseq
        %v567 = vshrl.u32 %v566, 7
        %v568 = vsub.s32 2, %v567
        %v569 = vrot.slane %v556, %v568
        %v573 = vmul.f32 %v550, %v561
        %v574 = vmul.f32 %v551, %v565
        %v575 = vmul.f32 %v552, %v569
        %v576 = vmul.f32 %v553, %v561
        %v577 = vmul.f32 %v554, %v565
        %v578 = vmul.f32 %v555, %v569
        %579 = vst [vmem:[#allocation3] sm:$0xff] 0.0
        %580 = vst [vmem:[#allocation3 + $0x28] sm:$0xff] 0.0
        %581 = vst [vmem:[#allocation3 + $0x20] sm:$0xff] 0.0
        %582 = vst [vmem:[#allocation3 + $0x48] sm:$0xff] 0.0
        %583 = vst [vmem:[#allocation3 + $0x8] sm:$0xff] %v573
        %584 = vst [vmem:[#allocation3 + $0x10] sm:$0xff] %v574
        %585 = vst [vmem:[#allocation3 + $0x18] sm:$0xff] %v575
        %586 = vst [vmem:[#allocation3 + $0x30] sm:$0xff] %v576
        %587 = vst [vmem:[#allocation3 + $0x38] sm:$0xff] %v577
        %588 = vst [vmem:[#allocation3 + $0x40] sm:$0xff] %v578
        %v589 = vld [vmem:[#allocation9] sm:$0xff]
        %v590 = vld [vmem:[#allocation9 + $0x8] sm:$0xff]
        %v591 = vld [vmem:[#allocation9 + $0x10] sm:$0xff]
        %v592 = vld [vmem:[#allocation9 + $0x18] sm:$0xff]
        %v593 = vld [vmem:[#allocation3] sm:$0xff]
        %v594 = vld [vmem:[#allocation3 + $0x8] sm:$0xff]
        %v595 = vld [vmem:[#allocation3 + $0x10] sm:$0xff]
        %v596 = vld [vmem:[#allocation3 + $0x18] sm:$0xff]
        %v597 = vld [vmem:[#allocation3 + $0x28] sm:$0xff]
        %v598 = vld [vmem:[#allocation3 + $0x30] sm:$0xff]
        %v599 = vld [vmem:[#allocation3 + $0x38] sm:$0xff]
        %v600 = vld [vmem:[#allocation3 + $0x40] sm:$0xff]
        %603 = vrot.lane.b32.xlu0 %v589, 112
        %v604 = vpop.permute.xlu0 %603
        %605 = vrot.lane.b32.xlu0 %v591, 112
        %v606 = vpop.permute.xlu0 %605
        %615 = vrot.lane.b32.xlu0 %v593, 18
        %v616 = vpop.permute.xlu0 %615
        %617 = vrot.lane.b32.xlu0 %v594, 18
        %v618 = vpop.permute.xlu0 %617
        %619 = vrot.lane.b32.xlu0 %v595, 18
        %v620 = vpop.permute.xlu0 %619
        %621 = vrot.lane.b32.xlu0 %v596, 18
        %v622 = vpop.permute.xlu0 %621
        %623 = vrot.lane.b32.xlu0 %v597, 18
        %v624 = vpop.permute.xlu0 %623
        %625 = vrot.lane.b32.xlu0 %v598, 18
        %v626 = vpop.permute.xlu0 %625
        %627 = vrot.lane.b32.xlu0 %v599, 18
        %v628 = vpop.permute.xlu0 %627
        %629 = vrot.lane.b32.xlu0 %v600, 18
        %v630 = vpop.permute.xlu0 %629
        %v631 = vsel %vm289, %v616, %v618
        %v632 = vsel %vm289, %v618, %v620
        %v633 = vsel %vm289, %v620, %v622
        %v634 = vsel %vm289, %v624, %v626
        %v635 = vsel %vm289, %v626, %v628
        %v636 = vsel %vm289, %v628, %v630
        %vm643 = vcmask 130048
        %v644 = vsel %vm643, %v604, 0
        %v646 = vsel %vm643, %v606, 0
        %648 = vmatprep.subr.mxu0 %v632
        %649 = vmatpush1.msra.mxu0 %v631
        %650 = vmatprep.subr.mxu0 %v635
        %651 = vmatpush1.msra.mxu0 %v634
        %652 = vmatprep.subr.mxu0 0.0
        %653 = vmatpush1.msra.mxu0 0.0
        %654 = vmatprep.subr.mxu0 0.0
        %655 = vmatpush1.msra.mxu0 0.0
        %656 = vmatprep.subr.mxu0 0.0
        %657 = vmatpush1.msra.mxu0 0.0
        %658 = vmatprep.subr.mxu0 0.0
        %659 = vmatpush1.msra.mxu0 0.0
        %660 = vmatprep.subr.mxu0 0.0
        %661 = vmatpush1.msra.mxu0 0.0
        %662 = vmatprep.subr.mxu0 0.0
        %663 = vmatpush1.msra.mxu0 0.0
        %664 = vmatprep.subr.mxu0 0.0
        %665 = vmatpush1.msra.mxu0 0.0
        %666 = vmatprep.subr.mxu0 0.0
        %667 = vmatpush1.msra.mxu0 0.0
        %668 = vmatprep.subr.mxu0 0.0
        %669 = vmatpush1.msra.mxu0 0.0
        %670 = vmatprep.subr.mxu0 0.0
        %671 = vmatpush1.msra.mxu0 0.0
        %672 = vmatprep.subr.mxu0 0.0
        %673 = vmatpush1.msra.mxu0 0.0
        %674 = vmatprep.subr.mxu0 0.0
        %675 = vmatpush1.msra.mxu0 0.0
        %676 = vmatprep.subr.mxu0 0.0
        %677 = vmatpush1.msra.mxu0 0.0
        %678 = vmatprep.subr.mxu0 0.0
        %679 = vmatpush1.msra.mxu0 0.0
        %680 = vmatprep.subr.mxu0 0.0
        %681 = vmatpush1.msra.mxu0 0.0
        %682 = vmatprep.subr.mxu0 0.0
        %683 = vmatpush1.msra.mxu0 0.0
        %684 = vmatprep.subr.mxu0 0.0
        %685 = vmatpush1.msra.mxu0 0.0
        %686 = vmatprep.subr.mxu0 0.0
        %687 = vmatpush1.msra.mxu0 0.0
        %688 = vmatprep.subr.mxu0 0.0
        %689 = vmatpush1.msra.mxu0 0.0
        %690 = vmatprep.subr.mxu0 0.0
        %691 = vmatpush1.msra.mxu0 0.0
        %692 = vmatprep.subr.mxu0 0.0
        %693 = vmatpush1.msra.mxu0 0.0
        %694 = vmatprep.subr.mxu0 0.0
        %695 = vmatpush1.msra.mxu0 0.0
        %696 = vmatprep.subr.mxu0 0.0
        %697 = vmatpush1.msra.mxu0 0.0
        %698 = vmatprep.subr.mxu0 0.0
        %699 = vmatpush1.msra.mxu0 0.0
        %700 = vmatprep.subr.mxu0 0.0
        %701 = vmatpush1.msra.mxu0 0.0
        %702 = vmatprep.subr.mxu0 0.0
        %703 = vmatpush1.msra.mxu0 0.0
        %704 = vmatprep.subr.mxu0 0.0
        %705 = vmatpush1.msra.mxu0 0.0
        %706 = vmatprep.subr.mxu0 0.0
        %707 = vmatpush1.msra.mxu0 0.0
        %708 = vmatprep.subr.mxu0 0.0
        %709 = vmatpush1.msra.mxu0 0.0
        %710 = vmatprep.subr.mxu0 0.0
        %711 = vmatpush1.msra.mxu0 0.0
        %712 = vmatprep.mubr.f32.mxu0 0.0
        %713 = vmatmul.mubr.f32.gmra.mrb[0].mxu0 %v644
        %v714 = vpop.f32.mrb[0].mxu0
        %v715 = vadd.f32 0.0, %v714
        %v716 = vpop.f32.mrb[0].mxu0
        %v717 = vadd.f32 0.0, %v716
        %718 = vmatprep.mubr.f32.mxu0 0.0
        %719 = vmatmul.mubr.f32.gmra.mrb[0].mxu0 %v646
        %v720 = vpop.f32.mrb[0].mxu0
        %v721 = vadd.f32 0.0, %v720
        %v722 = vpop.f32.mrb[0].mxu0
        %v723 = vadd.f32 0.0, %v722
        %724 = vdwg.mxu0
        %725 = vmatprep.subr.mxu0 0.0
        %726 = vmatpush1.msra.mxu0 %v633
        %727 = vmatprep.subr.mxu0 0.0
        %728 = vmatpush1.msra.mxu0 %v636
        %729 = vmatprep.subr.mxu0 0.0
        %730 = vmatpush1.msra.mxu0 0.0
        %731 = vmatprep.subr.mxu0 0.0
        %732 = vmatpush1.msra.mxu0 0.0
        %733 = vmatprep.subr.mxu0 0.0
        %734 = vmatpush1.msra.mxu0 0.0
        %735 = vmatprep.subr.mxu0 0.0
        %736 = vmatpush1.msra.mxu0 0.0
        %737 = vmatprep.subr.mxu0 0.0
        %738 = vmatpush1.msra.mxu0 0.0
        %739 = vmatprep.subr.mxu0 0.0
        %740 = vmatpush1.msra.mxu0 0.0
        %741 = vmatprep.subr.mxu0 0.0
        %742 = vmatpush1.msra.mxu0 0.0
        %743 = vmatprep.subr.mxu0 0.0
        %744 = vmatpush1.msra.mxu0 0.0
        %745 = vmatprep.subr.mxu0 0.0
        %746 = vmatpush1.msra.mxu0 0.0
        %747 = vmatprep.subr.mxu0 0.0
        %748 = vmatpush1.msra.mxu0 0.0
        %749 = vmatprep.subr.mxu0 0.0
        %750 = vmatpush1.msra.mxu0 0.0
        %751 = vmatprep.subr.mxu0 0.0
        %752 = vmatpush1.msra.mxu0 0.0
        %753 = vmatprep.subr.mxu0 0.0
        %754 = vmatpush1.msra.mxu0 0.0
        %755 = vmatprep.subr.mxu0 0.0
        %756 = vmatpush1.msra.mxu0 0.0
        %757 = vmatprep.subr.mxu0 0.0
        %758 = vmatpush1.msra.mxu0 0.0
        %759 = vmatprep.subr.mxu0 0.0
        %760 = vmatpush1.msra.mxu0 0.0
        %761 = vmatprep.subr.mxu0 0.0
        %762 = vmatpush1.msra.mxu0 0.0
        %763 = vmatprep.subr.mxu0 0.0
        %764 = vmatpush1.msra.mxu0 0.0
        %765 = vmatprep.subr.mxu0 0.0
        %766 = vmatpush1.msra.mxu0 0.0
        %767 = vmatprep.subr.mxu0 0.0
        %768 = vmatpush1.msra.mxu0 0.0
        %769 = vmatprep.subr.mxu0 0.0
        %770 = vmatpush1.msra.mxu0 0.0
        %771 = vmatprep.subr.mxu0 0.0
        %772 = vmatpush1.msra.mxu0 0.0
        %773 = vmatprep.subr.mxu0 0.0
        %774 = vmatpush1.msra.mxu0 0.0
        %775 = vmatprep.subr.mxu0 0.0
        %776 = vmatpush1.msra.mxu0 0.0
        %777 = vmatprep.subr.mxu0 0.0
        %778 = vmatpush1.msra.mxu0 0.0
        %779 = vmatprep.subr.mxu0 0.0
        %780 = vmatpush1.msra.mxu0 0.0
        %781 = vmatprep.subr.mxu0 0.0
        %782 = vmatpush1.msra.mxu0 0.0
        %783 = vmatprep.subr.mxu0 0.0
        %784 = vmatpush1.msra.mxu0 0.0
        %785 = vmatprep.subr.mxu0 0.0
        %786 = vmatpush1.msra.mxu0 0.0
        %787 = vmatprep.subr.mxu0 0.0
        %788 = vmatpush1.msra.mxu0 0.0
        %789 = vmatprep.mubr.f32.mxu0 0.0
        %790 = vmatmul.mubr.f32.gmra.mrb[0].mxu0 %v644
        %v791 = vpop.f32.mrb[0].mxu0
        %v792 = vadd.f32 0.0, %v791
        %v793 = vpop.f32.mrb[0].mxu0
        %794 = vmatprep.mubr.f32.mxu0 0.0
        %795 = vmatmul.mubr.f32.gmra.mrb[0].mxu0 %v646
        %v796 = vpop.f32.mrb[0].mxu0
        %v797 = vadd.f32 0.0, %v796
        %v798 = vpop.f32.mrb[0].mxu0
        %799 = vdwg.mxu0
        %800 = vrot.lane.b32.xlu0 %v593, 19
        %v801 = vpop.permute.xlu0 %800
        %802 = vrot.lane.b32.xlu0 %v594, 19
        %v803 = vpop.permute.xlu0 %802
        %804 = vrot.lane.b32.xlu0 %v595, 19
        %v805 = vpop.permute.xlu0 %804
        %806 = vrot.lane.b32.xlu0 %v596, 19
        %v807 = vpop.permute.xlu0 %806
        %808 = vrot.lane.b32.xlu0 %v597, 19
        %v809 = vpop.permute.xlu0 %808
        %810 = vrot.lane.b32.xlu0 %v598, 19
        %v811 = vpop.permute.xlu0 %810
        %812 = vrot.lane.b32.xlu0 %v599, 19
        %v813 = vpop.permute.xlu0 %812
        %814 = vrot.lane.b32.xlu0 %v600, 19
        %v815 = vpop.permute.xlu0 %814
        %v816 = vsel %vm275, %v801, %v803
        %v817 = vsel %vm275, %v803, %v805
        %v818 = vsel %vm275, %v805, %v807
        %v819 = vsel %vm275, %v809, %v811
        %v820 = vsel %vm275, %v811, %v813
        %v821 = vsel %vm275, %v813, %v815
        %v828 = vsel %vm643, %v589, 0
        %v830 = vsel %vm643, %v591, 0
        %832 = vmatprep.subr.mxu0 %v817
        %833 = vmatpush1.msra.mxu0 %v816
        %834 = vmatprep.subr.mxu0 %v820
        %835 = vmatpush1.msra.mxu0 %v819
        %836 = vmatprep.subr.mxu0 0.0
        %837 = vmatpush1.msra.mxu0 0.0
        %838 = vmatprep.subr.mxu0 0.0
        %839 = vmatpush1.msra.mxu0 0.0
        %840 = vmatprep.subr.mxu0 0.0
        %841 = vmatpush1.msra.mxu0 0.0
        %842 = vmatprep.subr.mxu0 0.0
        %843 = vmatpush1.msra.mxu0 0.0
        %844 = vmatprep.subr.mxu0 0.0
        %845 = vmatpush1.msra.mxu0 0.0
        %846 = vmatprep.subr.mxu0 0.0
        %847 = vmatpush1.msra.mxu0 0.0
        %848 = vmatprep.subr.mxu0 0.0
        %849 = vmatpush1.msra.mxu0 0.0
        %850 = vmatprep.subr.mxu0 0.0
        %851 = vmatpush1.msra.mxu0 0.0
        %852 = vmatprep.subr.mxu0 0.0
        %853 = vmatpush1.msra.mxu0 0.0
        %854 = vmatprep.subr.mxu0 0.0
        %855 = vmatpush1.msra.mxu0 0.0
        %856 = vmatprep.subr.mxu0 0.0
        %857 = vmatpush1.msra.mxu0 0.0
        %858 = vmatprep.subr.mxu0 0.0
        %859 = vmatpush1.msra.mxu0 0.0
        %860 = vmatprep.subr.mxu0 0.0
        %861 = vmatpush1.msra.mxu0 0.0
        %862 = vmatprep.subr.mxu0 0.0
        %863 = vmatpush1.msra.mxu0 0.0
        %864 = vmatprep.subr.mxu0 0.0
        %865 = vmatpush1.msra.mxu0 0.0
        %866 = vmatprep.subr.mxu0 0.0
        %867 = vmatpush1.msra.mxu0 0.0
        %868 = vmatprep.subr.mxu0 0.0
        %869 = vmatpush1.msra.mxu0 0.0
        %870 = vmatprep.subr.mxu0 0.0
        %871 = vmatpush1.msra.mxu0 0.0
        %872 = vmatprep.subr.mxu0 0.0
        %873 = vmatpush1.msra.mxu0 0.0
        %874 = vmatprep.subr.mxu0 0.0
        %875 = vmatpush1.msra.mxu0 0.0
        %876 = vmatprep.subr.mxu0 0.0
        %877 = vmatpush1.msra.mxu0 0.0
        %878 = vmatprep.subr.mxu0 0.0
        %879 = vmatpush1.msra.mxu0 0.0
        %880 = vmatprep.subr.mxu0 0.0
        %881 = vmatpush1.msra.mxu0 0.0
        %882 = vmatprep.subr.mxu0 0.0
        %883 = vmatpush1.msra.mxu0 0.0
        %884 = vmatprep.subr.mxu0 0.0
        %885 = vmatpush1.msra.mxu0 0.0
        %886 = vmatprep.subr.mxu0 0.0
        %887 = vmatpush1.msra.mxu0 0.0
        %888 = vmatprep.subr.mxu0 0.0
        %889 = vmatpush1.msra.mxu0 0.0
        %890 = vmatprep.subr.mxu0 0.0
        %891 = vmatpush1.msra.mxu0 0.0
        %892 = vmatprep.subr.mxu0 0.0
        %893 = vmatpush1.msra.mxu0 0.0
        %894 = vmatprep.subr.mxu0 0.0
        %895 = vmatpush1.msra.mxu0 0.0
        %896 = vmatprep.mubr.f32.mxu0 0.0
        %897 = vmatmul.mubr.f32.gmra.mrb[0].mxu0 %v828
        %v898 = vpop.f32.mrb[0].mxu0
        %v899 = vadd.f32 %v715, %v898
        %v900 = vpop.f32.mrb[0].mxu0
        %v901 = vadd.f32 %v717, %v900
        %902 = vmatprep.mubr.f32.mxu0 0.0
        %903 = vmatmul.mubr.f32.gmra.mrb[0].mxu0 %v830
        %v904 = vpop.f32.mrb[0].mxu0
        %v905 = vadd.f32 %v721, %v904
        %v906 = vpop.f32.mrb[0].mxu0
        %v907 = vadd.f32 %v723, %v906
        %908 = vdwg.mxu0
        %909 = vmatprep.subr.mxu0 0.0
        %910 = vmatpush1.msra.mxu0 %v818
        %911 = vmatprep.subr.mxu0 0.0
        %912 = vmatpush1.msra.mxu0 %v821
        %913 = vmatprep.subr.mxu0 0.0
        %914 = vmatpush1.msra.mxu0 0.0
        %915 = vmatprep.subr.mxu0 0.0
        %916 = vmatpush1.msra.mxu0 0.0
        %917 = vmatprep.subr.mxu0 0.0
        %918 = vmatpush1.msra.mxu0 0.0
        %919 = vmatprep.subr.mxu0 0.0
        %920 = vmatpush1.msra.mxu0 0.0
        %921 = vmatprep.subr.mxu0 0.0
        %922 = vmatpush1.msra.mxu0 0.0
        %923 = vmatprep.subr.mxu0 0.0
        %924 = vmatpush1.msra.mxu0 0.0
        %925 = vmatprep.subr.mxu0 0.0
        %926 = vmatpush1.msra.mxu0 0.0
        %927 = vmatprep.subr.mxu0 0.0
        %928 = vmatpush1.msra.mxu0 0.0
        %929 = vmatprep.subr.mxu0 0.0
        %930 = vmatpush1.msra.mxu0 0.0
        %931 = vmatprep.subr.mxu0 0.0
        %932 = vmatpush1.msra.mxu0 0.0
        %933 = vmatprep.subr.mxu0 0.0
        %934 = vmatpush1.msra.mxu0 0.0
        %935 = vmatprep.subr.mxu0 0.0
        %936 = vmatpush1.msra.mxu0 0.0
        %937 = vmatprep.subr.mxu0 0.0
        %938 = vmatpush1.msra.mxu0 0.0
        %939 = vmatprep.subr.mxu0 0.0
        %940 = vmatpush1.msra.mxu0 0.0
        %941 = vmatprep.subr.mxu0 0.0
        %942 = vmatpush1.msra.mxu0 0.0
        %943 = vmatprep.subr.mxu0 0.0
        %944 = vmatpush1.msra.mxu0 0.0
        %945 = vmatprep.subr.mxu0 0.0
        %946 = vmatpush1.msra.mxu0 0.0
        %947 = vmatprep.subr.mxu0 0.0
        %948 = vmatpush1.msra.mxu0 0.0
        %949 = vmatprep.subr.mxu0 0.0
        %950 = vmatpush1.msra.mxu0 0.0
        %951 = vmatprep.subr.mxu0 0.0
        %952 = vmatpush1.msra.mxu0 0.0
        %953 = vmatprep.subr.mxu0 0.0
        %954 = vmatpush1.msra.mxu0 0.0
        %955 = vmatprep.subr.mxu0 0.0
        %956 = vmatpush1.msra.mxu0 0.0
        %957 = vmatprep.subr.mxu0 0.0
        %958 = vmatpush1.msra.mxu0 0.0
        %959 = vmatprep.subr.mxu0 0.0
        %960 = vmatpush1.msra.mxu0 0.0
        %961 = vmatprep.subr.mxu0 0.0
        %962 = vmatpush1.msra.mxu0 0.0
        %963 = vmatprep.subr.mxu0 0.0
        %964 = vmatpush1.msra.mxu0 0.0
        %965 = vmatprep.subr.mxu0 0.0
        %966 = vmatpush1.msra.mxu0 0.0
        %967 = vmatprep.subr.mxu0 0.0
        %968 = vmatpush1.msra.mxu0 0.0
        %969 = vmatprep.subr.mxu0 0.0
        %970 = vmatpush1.msra.mxu0 0.0
        %971 = vmatprep.subr.mxu0 0.0
        %972 = vmatpush1.msra.mxu0 0.0
        %973 = vmatprep.mubr.f32.mxu0 0.0
        %974 = vmatmul.mubr.f32.gmra.mrb[0].mxu0 %v828
        %v975 = vpop.f32.mrb[0].mxu0
        %v976 = vadd.f32 %v792, %v975
        %v977 = vpop.f32.mrb[0].mxu0
        %978 = vmatprep.mubr.f32.mxu0 0.0
        %979 = vmatmul.mubr.f32.gmra.mrb[0].mxu0 %v830
        %v980 = vpop.f32.mrb[0].mxu0
        %v981 = vadd.f32 %v797, %v980
        %v982 = vpop.f32.mrb[0].mxu0
        %983 = vdwg.mxu0
        %984 = vrot.lane.b32.xlu0 %v589, 96
        %v985 = vpop.permute.xlu0 %984
        %986 = vrot.lane.b32.xlu0 %v591, 96
        %v987 = vpop.permute.xlu0 %986
        %988 = vrot.lane.b32.xlu0 %v593, 17
        %v989 = vpop.permute.xlu0 %988
        %990 = vrot.lane.b32.xlu0 %v594, 17
        %v991 = vpop.permute.xlu0 %990
        %992 = vrot.lane.b32.xlu0 %v595, 17
        %v993 = vpop.permute.xlu0 %992
        %994 = vrot.lane.b32.xlu0 %v596, 17
        %v995 = vpop.permute.xlu0 %994
        %996 = vrot.lane.b32.xlu0 %v597, 17
        %v997 = vpop.permute.xlu0 %996
        %998 = vrot.lane.b32.xlu0 %v598, 17
        %v999 = vpop.permute.xlu0 %998
        %1000 = vrot.lane.b32.xlu0 %v599, 17
        %v1001 = vpop.permute.xlu0 %1000
        %1002 = vrot.lane.b32.xlu0 %v600, 17
        %v1003 = vpop.permute.xlu0 %1002
        %v1004 = vsel %vm300, %v989, %v991
        %v1005 = vsel %vm300, %v991, %v993
        %v1006 = vsel %vm300, %v993, %v995
        %v1007 = vsel %vm300, %v997, %v999
        %v1008 = vsel %vm300, %v999, %v1001
        %v1009 = vsel %vm300, %v1001, %v1003
        %v1016 = vsel %vm643, %v985, 0
        %v1018 = vsel %vm643, %v987, 0
        %1020 = vmatprep.subr.mxu0 %v1005
        %1021 = vmatpush1.msra.mxu0 %v1004
        %1022 = vmatprep.subr.mxu0 %v1008
        %1023 = vmatpush1.msra.mxu0 %v1007
        %1024 = vmatprep.subr.mxu0 0.0
        %1025 = vmatpush1.msra.mxu0 0.0
        %1026 = vmatprep.subr.mxu0 0.0
        %1027 = vmatpush1.msra.mxu0 0.0
        %1028 = vmatprep.subr.mxu0 0.0
        %1029 = vmatpush1.msra.mxu0 0.0
        %1030 = vmatprep.subr.mxu0 0.0
        %1031 = vmatpush1.msra.mxu0 0.0
        %1032 = vmatprep.subr.mxu0 0.0
        %1033 = vmatpush1.msra.mxu0 0.0
        %1034 = vmatprep.subr.mxu0 0.0
        %1035 = vmatpush1.msra.mxu0 0.0
        %1036 = vmatprep.subr.mxu0 0.0
        %1037 = vmatpush1.msra.mxu0 0.0
        %1038 = vmatprep.subr.mxu0 0.0
        %1039 = vmatpush1.msra.mxu0 0.0
        %1040 = vmatprep.subr.mxu0 0.0
        %1041 = vmatpush1.msra.mxu0 0.0
        %1042 = vmatprep.subr.mxu0 0.0
        %1043 = vmatpush1.msra.mxu0 0.0
        %1044 = vmatprep.subr.mxu0 0.0
        %1045 = vmatpush1.msra.mxu0 0.0
        %1046 = vmatprep.subr.mxu0 0.0
        %1047 = vmatpush1.msra.mxu0 0.0
        %1048 = vmatprep.subr.mxu0 0.0
        %1049 = vmatpush1.msra.mxu0 0.0
        %1050 = vmatprep.subr.mxu0 0.0
        %1051 = vmatpush1.msra.mxu0 0.0
        %1052 = vmatprep.subr.mxu0 0.0
        %1053 = vmatpush1.msra.mxu0 0.0
        %1054 = vmatprep.subr.mxu0 0.0
        %1055 = vmatpush1.msra.mxu0 0.0
        %1056 = vmatprep.subr.mxu0 0.0
        %1057 = vmatpush1.msra.mxu0 0.0
        %1058 = vmatprep.subr.mxu0 0.0
        %1059 = vmatpush1.msra.mxu0 0.0
        %1060 = vmatprep.subr.mxu0 0.0
        %1061 = vmatpush1.msra.mxu0 0.0
        %1062 = vmatprep.subr.mxu0 0.0
        %1063 = vmatpush1.msra.mxu0 0.0
        %1064 = vmatprep.subr.mxu0 0.0
        %1065 = vmatpush1.msra.mxu0 0.0
        %1066 = vmatprep.subr.mxu0 0.0
        %1067 = vmatpush1.msra.mxu0 0.0
        %1068 = vmatprep.subr.mxu0 0.0
        %1069 = vmatpush1.msra.mxu0 0.0
        %1070 = vmatprep.subr.mxu0 0.0
        %1071 = vmatpush1.msra.mxu0 0.0
        %1072 = vmatprep.subr.mxu0 0.0
        %1073 = vmatpush1.msra.mxu0 0.0
        %1074 = vmatprep.subr.mxu0 0.0
        %1075 = vmatpush1.msra.mxu0 0.0
        %1076 = vmatprep.subr.mxu0 0.0
        %1077 = vmatpush1.msra.mxu0 0.0
        %1078 = vmatprep.subr.mxu0 0.0
        %1079 = vmatpush1.msra.mxu0 0.0
        %1080 = vmatprep.subr.mxu0 0.0
        %1081 = vmatpush1.msra.mxu0 0.0
        %1082 = vmatprep.subr.mxu0 0.0
        %1083 = vmatpush1.msra.mxu0 0.0
        %1084 = vmatprep.mubr.f32.mxu0 0.0
        %1085 = vmatmul.mubr.f32.gmra.mrb[0].mxu0 %v1016
        %v1086 = vpop.f32.mrb[0].mxu0
        %v1087 = vadd.f32 0.0, %v1086
        %v1088 = vpop.f32.mrb[0].mxu0
        %v1089 = vadd.f32 0.0, %v1088
        %1090 = vmatprep.mubr.f32.mxu0 0.0
        %1091 = vmatmul.mubr.f32.gmra.mrb[0].mxu0 %v1018
        %v1092 = vpop.f32.mrb[0].mxu0
        %v1093 = vadd.f32 0.0, %v1092
        %v1094 = vpop.f32.mrb[0].mxu0
        %v1095 = vadd.f32 0.0, %v1094
        %1096 = vdwg.mxu0
        %1097 = vmatprep.subr.mxu0 0.0
        %1098 = vmatpush1.msra.mxu0 %v1006
        %1099 = vmatprep.subr.mxu0 0.0
        %1100 = vmatpush1.msra.mxu0 %v1009
        %1101 = vmatprep.subr.mxu0 0.0
        %1102 = vmatpush1.msra.mxu0 0.0
        %1103 = vmatprep.subr.mxu0 0.0
        %1104 = vmatpush1.msra.mxu0 0.0
        %1105 = vmatprep.subr.mxu0 0.0
        %1106 = vmatpush1.msra.mxu0 0.0
        %1107 = vmatprep.subr.mxu0 0.0
        %1108 = vmatpush1.msra.mxu0 0.0
        %1109 = vmatprep.subr.mxu0 0.0
        %1110 = vmatpush1.msra.mxu0 0.0
        %1111 = vmatprep.subr.mxu0 0.0
        %1112 = vmatpush1.msra.mxu0 0.0
        %1113 = vmatprep.subr.mxu0 0.0
        %1114 = vmatpush1.msra.mxu0 0.0
        %1115 = vmatprep.subr.mxu0 0.0
        %1116 = vmatpush1.msra.mxu0 0.0
        %1117 = vmatprep.subr.mxu0 0.0
        %1118 = vmatpush1.msra.mxu0 0.0
        %1119 = vmatprep.subr.mxu0 0.0
        %1120 = vmatpush1.msra.mxu0 0.0
        %1121 = vmatprep.subr.mxu0 0.0
        %1122 = vmatpush1.msra.mxu0 0.0
        %1123 = vmatprep.subr.mxu0 0.0
        %1124 = vmatpush1.msra.mxu0 0.0
        %1125 = vmatprep.subr.mxu0 0.0
        %1126 = vmatpush1.msra.mxu0 0.0
        %1127 = vmatprep.subr.mxu0 0.0
        %1128 = vmatpush1.msra.mxu0 0.0
        %1129 = vmatprep.subr.mxu0 0.0
        %1130 = vmatpush1.msra.mxu0 0.0
        %1131 = vmatprep.subr.mxu0 0.0
        %1132 = vmatpush1.msra.mxu0 0.0
        %1133 = vmatprep.subr.mxu0 0.0
        %1134 = vmatpush1.msra.mxu0 0.0
        %1135 = vmatprep.subr.mxu0 0.0
        %1136 = vmatpush1.msra.mxu0 0.0
        %1137 = vmatprep.subr.mxu0 0.0
        %1138 = vmatpush1.msra.mxu0 0.0
        %1139 = vmatprep.subr.mxu0 0.0
        %1140 = vmatpush1.msra.mxu0 0.0
        %1141 = vmatprep.subr.mxu0 0.0
        %1142 = vmatpush1.msra.mxu0 0.0
        %1143 = vmatprep.subr.mxu0 0.0
        %1144 = vmatpush1.msra.mxu0 0.0
        %1145 = vmatprep.subr.mxu0 0.0
        %1146 = vmatpush1.msra.mxu0 0.0
        %1147 = vmatprep.subr.mxu0 0.0
        %1148 = vmatpush1.msra.mxu0 0.0
        %1149 = vmatprep.subr.mxu0 0.0
        %1150 = vmatpush1.msra.mxu0 0.0
        %1151 = vmatprep.subr.mxu0 0.0
        %1152 = vmatpush1.msra.mxu0 0.0
        %1153 = vmatprep.subr.mxu0 0.0
        %1154 = vmatpush1.msra.mxu0 0.0
        %1155 = vmatprep.subr.mxu0 0.0
        %1156 = vmatpush1.msra.mxu0 0.0
        %1157 = vmatprep.subr.mxu0 0.0
        %1158 = vmatpush1.msra.mxu0 0.0
        %1159 = vmatprep.subr.mxu0 0.0
        %1160 = vmatpush1.msra.mxu0 0.0
        %1161 = vmatprep.mubr.f32.mxu0 0.0
        %1162 = vmatmul.mubr.f32.gmra.mrb[0].mxu0 %v1016
        %v1163 = vpop.f32.mrb[0].mxu0
        %v1164 = vadd.f32 0.0, %v1163
        %v1165 = vpop.f32.mrb[0].mxu0
        %1166 = vmatprep.mubr.f32.mxu0 0.0
        %1167 = vmatmul.mubr.f32.gmra.mrb[0].mxu0 %v1018
        %v1168 = vpop.f32.mrb[0].mxu0
        %v1169 = vadd.f32 0.0, %v1168
        %v1170 = vpop.f32.mrb[0].mxu0
        %1171 = vdwg.mxu0
        %v1172 = vadd.f32 %v899, %v1087
        %v1173 = vadd.f32 %v901, %v1089
        %v1174 = vadd.f32 %v976, %v1164
        %v1175 = vadd.f32 %v905, %v1093
        %v1176 = vadd.f32 %v907, %v1095
        %v1177 = vadd.f32 %v981, %v1169
        %1178 = vrot.lane.b32.xlu0 %v589, 80
        %v1179 = vpop.permute.xlu0 %1178
        %1180 = vrot.lane.b32.xlu0 %v591, 80
        %v1181 = vpop.permute.xlu0 %1180
        %1182 = vrot.lane.b32.xlu0 %v593, 1
        %v1183 = vpop.permute.xlu0 %1182
        %1184 = vrot.lane.b32.xlu0 %v594, 1
        %v1185 = vpop.permute.xlu0 %1184
        %1186 = vrot.lane.b32.xlu0 %v595, 1
        %v1187 = vpop.permute.xlu0 %1186
        %1188 = vrot.lane.b32.xlu0 %v596, 1
        %v1189 = vpop.permute.xlu0 %1188
        %1190 = vrot.lane.b32.xlu0 %v597, 1
        %v1191 = vpop.permute.xlu0 %1190
        %1192 = vrot.lane.b32.xlu0 %v598, 1
        %v1193 = vpop.permute.xlu0 %1192
        %1194 = vrot.lane.b32.xlu0 %v599, 1
        %v1195 = vpop.permute.xlu0 %1194
        %1196 = vrot.lane.b32.xlu0 %v600, 1
        %v1197 = vpop.permute.xlu0 %1196
        %v1198 = vsel %vm311, %v1183, %v1185
        %v1199 = vsel %vm311, %v1185, %v1187
        %v1200 = vsel %vm311, %v1187, %v1189
        %v1201 = vsel %vm311, %v1191, %v1193
        %v1202 = vsel %vm311, %v1193, %v1195
        %v1203 = vsel %vm311, %v1195, %v1197
        %v1210 = vsel %vm643, %v1179, 0
        %v1212 = vsel %vm643, %v1181, 0
        %1214 = vmatprep.subr.mxu0 %v1199
        %1215 = vmatpush1.msra.mxu0 %v1198
        %1216 = vmatprep.subr.mxu0 %v1202
        %1217 = vmatpush1.msra.mxu0 %v1201
        %1218 = vmatprep.subr.mxu0 0.0
        %1219 = vmatpush1.msra.mxu0 0.0
        %1220 = vmatprep.subr.mxu0 0.0
        %1221 = vmatpush1.msra.mxu0 0.0
        %1222 = vmatprep.subr.mxu0 0.0
        %1223 = vmatpush1.msra.mxu0 0.0
        %1224 = vmatprep.subr.mxu0 0.0
        %1225 = vmatpush1.msra.mxu0 0.0
        %1226 = vmatprep.subr.mxu0 0.0
        %1227 = vmatpush1.msra.mxu0 0.0
        %1228 = vmatprep.subr.mxu0 0.0
        %1229 = vmatpush1.msra.mxu0 0.0
        %1230 = vmatprep.subr.mxu0 0.0
        %1231 = vmatpush1.msra.mxu0 0.0
        %1232 = vmatprep.subr.mxu0 0.0
        %1233 = vmatpush1.msra.mxu0 0.0
        %1234 = vmatprep.subr.mxu0 0.0
        %1235 = vmatpush1.msra.mxu0 0.0
        %1236 = vmatprep.subr.mxu0 0.0
        %1237 = vmatpush1.msra.mxu0 0.0
        %1238 = vmatprep.subr.mxu0 0.0
        %1239 = vmatpush1.msra.mxu0 0.0
        %1240 = vmatprep.subr.mxu0 0.0
        %1241 = vmatpush1.msra.mxu0 0.0
        %1242 = vmatprep.subr.mxu0 0.0
        %1243 = vmatpush1.msra.mxu0 0.0
        %1244 = vmatprep.subr.mxu0 0.0
        %1245 = vmatpush1.msra.mxu0 0.0
        %1246 = vmatprep.subr.mxu0 0.0
        %1247 = vmatpush1.msra.mxu0 0.0
        %1248 = vmatprep.subr.mxu0 0.0
        %1249 = vmatpush1.msra.mxu0 0.0
        %1250 = vmatprep.subr.mxu0 0.0
        %1251 = vmatpush1.msra.mxu0 0.0
        %1252 = vmatprep.subr.mxu0 0.0
        %1253 = vmatpush1.msra.mxu0 0.0
        %1254 = vmatprep.subr.mxu0 0.0
        %1255 = vmatpush1.msra.mxu0 0.0
        %1256 = vmatprep.subr.mxu0 0.0
        %1257 = vmatpush1.msra.mxu0 0.0
        %1258 = vmatprep.subr.mxu0 0.0
        %1259 = vmatpush1.msra.mxu0 0.0
        %1260 = vmatprep.subr.mxu0 0.0
        %1261 = vmatpush1.msra.mxu0 0.0
        %1262 = vmatprep.subr.mxu0 0.0
        %1263 = vmatpush1.msra.mxu0 0.0
        %1264 = vmatprep.subr.mxu0 0.0
        %1265 = vmatpush1.msra.mxu0 0.0
        %1266 = vmatprep.subr.mxu0 0.0
        %1267 = vmatpush1.msra.mxu0 0.0
        %1268 = vmatprep.subr.mxu0 0.0
        %1269 = vmatpush1.msra.mxu0 0.0
        %1270 = vmatprep.subr.mxu0 0.0
        %1271 = vmatpush1.msra.mxu0 0.0
        %1272 = vmatprep.subr.mxu0 0.0
        %1273 = vmatpush1.msra.mxu0 0.0
        %1274 = vmatprep.subr.mxu0 0.0
        %1275 = vmatpush1.msra.mxu0 0.0
        %1276 = vmatprep.subr.mxu0 0.0
        %1277 = vmatpush1.msra.mxu0 0.0
        %1278 = vmatprep.mubr.f32.mxu0 0.0
        %1279 = vmatmul.mubr.f32.gmra.mrb[0].mxu0 %v1210
        %v1280 = vpop.f32.mrb[0].mxu0
        %v1281 = vadd.f32 0.0, %v1280
        %v1282 = vpop.f32.mrb[0].mxu0
        %v1283 = vadd.f32 0.0, %v1282
        %1284 = vmatprep.mubr.f32.mxu0 0.0
        %1285 = vmatmul.mubr.f32.gmra.mrb[0].mxu0 %v1212
        %v1286 = vpop.f32.mrb[0].mxu0
        %v1287 = vadd.f32 0.0, %v1286
        %v1288 = vpop.f32.mrb[0].mxu0
        %v1289 = vadd.f32 0.0, %v1288
        %1290 = vdwg.mxu0
        %1291 = vmatprep.subr.mxu0 0.0
        %1292 = vmatpush1.msra.mxu0 %v1200
        %1293 = vmatprep.subr.mxu0 0.0
        %1294 = vmatpush1.msra.mxu0 %v1203
        %1295 = vmatprep.subr.mxu0 0.0
        %1296 = vmatpush1.msra.mxu0 0.0
        %1297 = vmatprep.subr.mxu0 0.0
        %1298 = vmatpush1.msra.mxu0 0.0
        %1299 = vmatprep.subr.mxu0 0.0
        %1300 = vmatpush1.msra.mxu0 0.0
        %1301 = vmatprep.subr.mxu0 0.0
        %1302 = vmatpush1.msra.mxu0 0.0
        %1303 = vmatprep.subr.mxu0 0.0
        %1304 = vmatpush1.msra.mxu0 0.0
        %1305 = vmatprep.subr.mxu0 0.0
        %1306 = vmatpush1.msra.mxu0 0.0
        %1307 = vmatprep.subr.mxu0 0.0
        %1308 = vmatpush1.msra.mxu0 0.0
        %1309 = vmatprep.subr.mxu0 0.0
        %1310 = vmatpush1.msra.mxu0 0.0
        %1311 = vmatprep.subr.mxu0 0.0
        %1312 = vmatpush1.msra.mxu0 0.0
        %1313 = vmatprep.subr.mxu0 0.0
        %1314 = vmatpush1.msra.mxu0 0.0
        %1315 = vmatprep.subr.mxu0 0.0
        %1316 = vmatpush1.msra.mxu0 0.0
        %1317 = vmatprep.subr.mxu0 0.0
        %1318 = vmatpush1.msra.mxu0 0.0
        %1319 = vmatprep.subr.mxu0 0.0
        %1320 = vmatpush1.msra.mxu0 0.0
        %1321 = vmatprep.subr.mxu0 0.0
        %1322 = vmatpush1.msra.mxu0 0.0
        %1323 = vmatprep.subr.mxu0 0.0
        %1324 = vmatpush1.msra.mxu0 0.0
        %1325 = vmatprep.subr.mxu0 0.0
        %1326 = vmatpush1.msra.mxu0 0.0
        %1327 = vmatprep.subr.mxu0 0.0
        %1328 = vmatpush1.msra.mxu0 0.0
        %1329 = vmatprep.subr.mxu0 0.0
        %1330 = vmatpush1.msra.mxu0 0.0
        %1331 = vmatprep.subr.mxu0 0.0
        %1332 = vmatpush1.msra.mxu0 0.0
        %1333 = vmatprep.subr.mxu0 0.0
        %1334 = vmatpush1.msra.mxu0 0.0
        %1335 = vmatprep.subr.mxu0 0.0
        %1336 = vmatpush1.msra.mxu0 0.0
        %1337 = vmatprep.subr.mxu0 0.0
        %1338 = vmatpush1.msra.mxu0 0.0
        %1339 = vmatprep.subr.mxu0 0.0
        %1340 = vmatpush1.msra.mxu0 0.0
        %1341 = vmatprep.subr.mxu0 0.0
        %1342 = vmatpush1.msra.mxu0 0.0
        %1343 = vmatprep.subr.mxu0 0.0
        %1344 = vmatpush1.msra.mxu0 0.0
        %1345 = vmatprep.subr.mxu0 0.0
        %1346 = vmatpush1.msra.mxu0 0.0
        %1347 = vmatprep.subr.mxu0 0.0
        %1348 = vmatpush1.msra.mxu0 0.0
        %1349 = vmatprep.subr.mxu0 0.0
        %1350 = vmatpush1.msra.mxu0 0.0
        %1351 = vmatprep.subr.mxu0 0.0
        %1352 = vmatpush1.msra.mxu0 0.0
        %1353 = vmatprep.subr.mxu0 0.0
        %1354 = vmatpush1.msra.mxu0 0.0
        %1355 = vmatprep.mubr.f32.mxu0 0.0
        %1356 = vmatmul.mubr.f32.gmra.mrb[0].mxu0 %v1210
        %v1357 = vpop.f32.mrb[0].mxu0
        %v1358 = vadd.f32 0.0, %v1357
        %v1359 = vpop.f32.mrb[0].mxu0
        %1360 = vmatprep.mubr.f32.mxu0 0.0
        %1361 = vmatmul.mubr.f32.gmra.mrb[0].mxu0 %v1212
        %v1362 = vpop.f32.mrb[0].mxu0
        %v1363 = vadd.f32 0.0, %v1362
        %v1364 = vpop.f32.mrb[0].mxu0
        %1365 = vdwg.mxu0
        %v1366 = vadd.f32 %v1172, %v1281
        %v1367 = vadd.f32 %v1173, %v1283
        %v1368 = vadd.f32 %v1174, %v1358
        %v1369 = vadd.f32 %v1175, %v1287
        %v1370 = vadd.f32 %v1176, %v1289
        %v1371 = vadd.f32 %v1177, %v1363
        %1372 = vrot.lane.b32.xlu0 %v589, 64
        %v1373 = vpop.permute.xlu0 %1372
        %1374 = vrot.lane.b32.xlu0 %v591, 64
        %v1375 = vpop.permute.xlu0 %1374
        %v1376 = vsel %vm643, %v1373, 0
        %v1378 = vsel %vm643, %v1375, 0
        %1380 = vmatprep.subr.mxu0 %v595
        %1381 = vmatpush1.msra.mxu0 %v594
        %1382 = vmatprep.subr.mxu0 %v599
        %1383 = vmatpush1.msra.mxu0 %v598
        %1384 = vmatprep.subr.mxu0 0.0
        %1385 = vmatpush1.msra.mxu0 0.0
        %1386 = vmatprep.subr.mxu0 0.0
        %1387 = vmatpush1.msra.mxu0 0.0
        %1388 = vmatprep.subr.mxu0 0.0
        %1389 = vmatpush1.msra.mxu0 0.0
        %1390 = vmatprep.subr.mxu0 0.0
        %1391 = vmatpush1.msra.mxu0 0.0
        %1392 = vmatprep.subr.mxu0 0.0
        %1393 = vmatpush1.msra.mxu0 0.0
        %1394 = vmatprep.subr.mxu0 0.0
        %1395 = vmatpush1.msra.mxu0 0.0
        %1396 = vmatprep.subr.mxu0 0.0
        %1397 = vmatpush1.msra.mxu0 0.0
        %1398 = vmatprep.subr.mxu0 0.0
        %1399 = vmatpush1.msra.mxu0 0.0
        %1400 = vmatprep.subr.mxu0 0.0
        %1401 = vmatpush1.msra.mxu0 0.0
        %1402 = vmatprep.subr.mxu0 0.0
        %1403 = vmatpush1.msra.mxu0 0.0
        %1404 = vmatprep.subr.mxu0 0.0
        %1405 = vmatpush1.msra.mxu0 0.0
        %1406 = vmatprep.subr.mxu0 0.0
        %1407 = vmatpush1.msra.mxu0 0.0
        %1408 = vmatprep.subr.mxu0 0.0
        %1409 = vmatpush1.msra.mxu0 0.0
        %1410 = vmatprep.subr.mxu0 0.0
        %1411 = vmatpush1.msra.mxu0 0.0
        %1412 = vmatprep.subr.mxu0 0.0
        %1413 = vmatpush1.msra.mxu0 0.0
        %1414 = vmatprep.subr.mxu0 0.0
        %1415 = vmatpush1.msra.mxu0 0.0
        %1416 = vmatprep.subr.mxu0 0.0
        %1417 = vmatpush1.msra.mxu0 0.0
        %1418 = vmatprep.subr.mxu0 0.0
        %1419 = vmatpush1.msra.mxu0 0.0
        %1420 = vmatprep.subr.mxu0 0.0
        %1421 = vmatpush1.msra.mxu0 0.0
        %1422 = vmatprep.subr.mxu0 0.0
        %1423 = vmatpush1.msra.mxu0 0.0
        %1424 = vmatprep.subr.mxu0 0.0
        %1425 = vmatpush1.msra.mxu0 0.0
        %1426 = vmatprep.subr.mxu0 0.0
        %1427 = vmatpush1.msra.mxu0 0.0
        %1428 = vmatprep.subr.mxu0 0.0
        %1429 = vmatpush1.msra.mxu0 0.0
        %1430 = vmatprep.subr.mxu0 0.0
        %1431 = vmatpush1.msra.mxu0 0.0
        %1432 = vmatprep.subr.mxu0 0.0
        %1433 = vmatpush1.msra.mxu0 0.0
        %1434 = vmatprep.subr.mxu0 0.0
        %1435 = vmatpush1.msra.mxu0 0.0
        %1436 = vmatprep.subr.mxu0 0.0
        %1437 = vmatpush1.msra.mxu0 0.0
        %1438 = vmatprep.subr.mxu0 0.0
        %1439 = vmatpush1.msra.mxu0 0.0
        %1440 = vmatprep.subr.mxu0 0.0
        %1441 = vmatpush1.msra.mxu0 0.0
        %1442 = vmatprep.subr.mxu0 0.0
        %1443 = vmatpush1.msra.mxu0 0.0
        %1444 = vmatprep.mubr.f32.mxu0 0.0
        %1445 = vmatmul.mubr.f32.gmra.mrb[0].mxu0 %v1376
        %v1446 = vpop.f32.mrb[0].mxu0
        %v1447 = vadd.f32 0.0, %v1446
        %v1448 = vpop.f32.mrb[0].mxu0
        %v1449 = vadd.f32 0.0, %v1448
        %1450 = vmatprep.mubr.f32.mxu0 0.0
        %1451 = vmatmul.mubr.f32.gmra.mrb[0].mxu0 %v1378
        %v1452 = vpop.f32.mrb[0].mxu0
        %v1453 = vadd.f32 0.0, %v1452
        %v1454 = vpop.f32.mrb[0].mxu0
        %v1455 = vadd.f32 0.0, %v1454
        %1456 = vdwg.mxu0
        %1457 = vmatprep.subr.mxu0 0.0
        %1458 = vmatpush1.msra.mxu0 %v596
        %1459 = vmatprep.subr.mxu0 0.0
        %1460 = vmatpush1.msra.mxu0 %v600
        %1461 = vmatprep.subr.mxu0 0.0
        %1462 = vmatpush1.msra.mxu0 0.0
        %1463 = vmatprep.subr.mxu0 0.0
        %1464 = vmatpush1.msra.mxu0 0.0
        %1465 = vmatprep.subr.mxu0 0.0
        %1466 = vmatpush1.msra.mxu0 0.0
        %1467 = vmatprep.subr.mxu0 0.0
        %1468 = vmatpush1.msra.mxu0 0.0
        %1469 = vmatprep.subr.mxu0 0.0
        %1470 = vmatpush1.msra.mxu0 0.0
        %1471 = vmatprep.subr.mxu0 0.0
        %1472 = vmatpush1.msra.mxu0 0.0
        %1473 = vmatprep.subr.mxu0 0.0
        %1474 = vmatpush1.msra.mxu0 0.0
        %1475 = vmatprep.subr.mxu0 0.0
        %1476 = vmatpush1.msra.mxu0 0.0
        %1477 = vmatprep.subr.mxu0 0.0
        %1478 = vmatpush1.msra.mxu0 0.0
        %1479 = vmatprep.subr.mxu0 0.0
        %1480 = vmatpush1.msra.mxu0 0.0
        %1481 = vmatprep.subr.mxu0 0.0
        %1482 = vmatpush1.msra.mxu0 0.0
        %1483 = vmatprep.subr.mxu0 0.0
        %1484 = vmatpush1.msra.mxu0 0.0
        %1485 = vmatprep.subr.mxu0 0.0
        %1486 = vmatpush1.msra.mxu0 0.0
        %1487 = vmatprep.subr.mxu0 0.0
        %1488 = vmatpush1.msra.mxu0 0.0
        %1489 = vmatprep.subr.mxu0 0.0
        %1490 = vmatpush1.msra.mxu0 0.0
        %1491 = vmatprep.subr.mxu0 0.0
        %1492 = vmatpush1.msra.mxu0 0.0
        %1493 = vmatprep.subr.mxu0 0.0
        %1494 = vmatpush1.msra.mxu0 0.0
        %1495 = vmatprep.subr.mxu0 0.0
        %1496 = vmatpush1.msra.mxu0 0.0
        %1497 = vmatprep.subr.mxu0 0.0
        %1498 = vmatpush1.msra.mxu0 0.0
        %1499 = vmatprep.subr.mxu0 0.0
        %1500 = vmatpush1.msra.mxu0 0.0
        %1501 = vmatprep.subr.mxu0 0.0
        %1502 = vmatpush1.msra.mxu0 0.0
        %1503 = vmatprep.subr.mxu0 0.0
        %1504 = vmatpush1.msra.mxu0 0.0
        %1505 = vmatprep.subr.mxu0 0.0
        %1506 = vmatpush1.msra.mxu0 0.0
        %1507 = vmatprep.subr.mxu0 0.0
        %1508 = vmatpush1.msra.mxu0 0.0
        %1509 = vmatprep.subr.mxu0 0.0
        %1510 = vmatpush1.msra.mxu0 0.0
        %1511 = vmatprep.subr.mxu0 0.0
        %1512 = vmatpush1.msra.mxu0 0.0
        %1513 = vmatprep.subr.mxu0 0.0
        %1514 = vmatpush1.msra.mxu0 0.0
        %1515 = vmatprep.subr.mxu0 0.0
        %1516 = vmatpush1.msra.mxu0 0.0
        %1517 = vmatprep.subr.mxu0 0.0
        %1518 = vmatpush1.msra.mxu0 0.0
        %1519 = vmatprep.subr.mxu0 0.0
        %1520 = vmatpush1.msra.mxu0 0.0
        %1521 = vmatprep.mubr.f32.mxu0 0.0
        %1522 = vmatmul.mubr.f32.gmra.mrb[0].mxu0 %v1376
        %v1523 = vpop.f32.mrb[0].mxu0
        %v1524 = vadd.f32 0.0, %v1523
        %v1525 = vpop.f32.mrb[0].mxu0
        %1526 = vmatprep.mubr.f32.mxu0 0.0
        %1527 = vmatmul.mubr.f32.gmra.mrb[0].mxu0 %v1378
        %v1528 = vpop.f32.mrb[0].mxu0
        %v1529 = vadd.f32 0.0, %v1528
        %v1530 = vpop.f32.mrb[0].mxu0
        %1531 = vdwg.mxu0
        %v1532 = vadd.f32 %v1366, %v1447
        %v1533 = vadd.f32 %v1367, %v1449
        %v1534 = vadd.f32 %v1368, %v1524
        %v1535 = vadd.f32 %v1369, %v1453
        %v1536 = vadd.f32 %v1370, %v1455
        %v1537 = vadd.f32 %v1371, %v1529
        %v1538 = vld [vmem:[#allocation3 + $0x8] sm:$0xff]
        %v1539 = vld [vmem:[#allocation3 + $0x10] sm:$0xff]
        %v1540 = vld [vmem:[#allocation3 + $0x18] sm:$0xff]
        %v1541 = vld [vmem:[#allocation3 + $0x20] sm:$0xff]
        %v1542 = vld [vmem:[#allocation3 + $0x30] sm:$0xff]
        %v1543 = vld [vmem:[#allocation3 + $0x38] sm:$0xff]
        %v1544 = vld [vmem:[#allocation3 + $0x40] sm:$0xff]
        %v1545 = vld [vmem:[#allocation3 + $0x48] sm:$0xff]
        %1546 = vrot.lane.b32.xlu0 %v589, 48
        %v1547 = vpop.permute.xlu0 %1546
        %1548 = vrot.lane.b32.xlu0 %v591, 48
        %v1549 = vpop.permute.xlu0 %1548
        %1558 = vrot.lane.b32.xlu0 %v1538, 127
        %v1559 = vpop.permute.xlu0 %1558
        %1560 = vrot.lane.b32.xlu0 %v1539, 127
        %v1561 = vpop.permute.xlu0 %1560
        %1562 = vrot.lane.b32.xlu0 %v1540, 127
        %v1563 = vpop.permute.xlu0 %1562
        %1564 = vrot.lane.b32.xlu0 %v1541, 127
        %v1565 = vpop.permute.xlu0 %1564
        %1566 = vrot.lane.b32.xlu0 %v1542, 127
        %v1567 = vpop.permute.xlu0 %1566
        %1568 = vrot.lane.b32.xlu0 %v1543, 127
        %v1569 = vpop.permute.xlu0 %1568
        %1570 = vrot.lane.b32.xlu0 %v1544, 127
        %v1571 = vpop.permute.xlu0 %1570
        %1572 = vrot.lane.b32.xlu0 %v1545, 127
        %v1573 = vpop.permute.xlu0 %1572
        %v1574 = vsel %vm326, %v1559, %v1561
        %v1575 = vsel %vm326, %v1561, %v1563
        %v1576 = vsel %vm326, %v1563, %v1565
        %v1577 = vsel %vm326, %v1567, %v1569
        %v1578 = vsel %vm326, %v1569, %v1571
        %v1579 = vsel %vm326, %v1571, %v1573
        %v1586 = vsel %vm643, %v1547, 0
        %v1588 = vsel %vm643, %v1549, 0
        %1590 = vmatprep.subr.mxu0 %v1575
        %1591 = vmatpush1.msra.mxu0 %v1574
        %1592 = vmatprep.subr.mxu0 %v1578
        %1593 = vmatpush1.msra.mxu0 %v1577
        %1594 = vmatprep.subr.mxu0 0.0
        %1595 = vmatpush1.msra.mxu0 0.0
        %1596 = vmatprep.subr.mxu0 0.0
        %1597 = vmatpush1.msra.mxu0 0.0
        %1598 = vmatprep.subr.mxu0 0.0
        %1599 = vmatpush1.msra.mxu0 0.0
        %1600 = vmatprep.subr.mxu0 0.0
        %1601 = vmatpush1.msra.mxu0 0.0
        %1602 = vmatprep.subr.mxu0 0.0
        %1603 = vmatpush1.msra.mxu0 0.0
        %1604 = vmatprep.subr.mxu0 0.0
        %1605 = vmatpush1.msra.mxu0 0.0
        %1606 = vmatprep.subr.mxu0 0.0
        %1607 = vmatpush1.msra.mxu0 0.0
        %1608 = vmatprep.subr.mxu0 0.0
        %1609 = vmatpush1.msra.mxu0 0.0
        %1610 = vmatprep.subr.mxu0 0.0
        %1611 = vmatpush1.msra.mxu0 0.0
        %1612 = vmatprep.subr.mxu0 0.0
        %1613 = vmatpush1.msra.mxu0 0.0
        %1614 = vmatprep.subr.mxu0 0.0
        %1615 = vmatpush1.msra.mxu0 0.0
        %1616 = vmatprep.subr.mxu0 0.0
        %1617 = vmatpush1.msra.mxu0 0.0
        %1618 = vmatprep.subr.mxu0 0.0
        %1619 = vmatpush1.msra.mxu0 0.0
        %1620 = vmatprep.subr.mxu0 0.0
        %1621 = vmatpush1.msra.mxu0 0.0
        %1622 = vmatprep.subr.mxu0 0.0
        %1623 = vmatpush1.msra.mxu0 0.0
        %1624 = vmatprep.subr.mxu0 0.0
        %1625 = vmatpush1.msra.mxu0 0.0
        %1626 = vmatprep.subr.mxu0 0.0
        %1627 = vmatpush1.msra.mxu0 0.0
        %1628 = vmatprep.subr.mxu0 0.0
        %1629 = vmatpush1.msra.mxu0 0.0
        %1630 = vmatprep.subr.mxu0 0.0
        %1631 = vmatpush1.msra.mxu0 0.0
        %1632 = vmatprep.subr.mxu0 0.0
        %1633 = vmatpush1.msra.mxu0 0.0
        %1634 = vmatprep.subr.mxu0 0.0
        %1635 = vmatpush1.msra.mxu0 0.0
        %1636 = vmatprep.subr.mxu0 0.0
        %1637 = vmatpush1.msra.mxu0 0.0
        %1638 = vmatprep.subr.mxu0 0.0
        %1639 = vmatpush1.msra.mxu0 0.0
        %1640 = vmatprep.subr.mxu0 0.0
        %1641 = vmatpush1.msra.mxu0 0.0
        %1642 = vmatprep.subr.mxu0 0.0
        %1643 = vmatpush1.msra.mxu0 0.0
        %1644 = vmatprep.subr.mxu0 0.0
        %1645 = vmatpush1.msra.mxu0 0.0
        %1646 = vmatprep.subr.mxu0 0.0
        %1647 = vmatpush1.msra.mxu0 0.0
        %1648 = vmatprep.subr.mxu0 0.0
        %1649 = vmatpush1.msra.mxu0 0.0
        %1650 = vmatprep.subr.mxu0 0.0
        %1651 = vmatpush1.msra.mxu0 0.0
        %1652 = vmatprep.subr.mxu0 0.0
        %1653 = vmatpush1.msra.mxu0 0.0
        %1654 = vmatprep.mubr.f32.mxu0 0.0
        %1655 = vmatmul.mubr.f32.gmra.mrb[0].mxu0 %v1586
        %v1656 = vpop.f32.mrb[0].mxu0
        %v1657 = vadd.f32 0.0, %v1656
        %v1658 = vpop.f32.mrb[0].mxu0
        %v1659 = vadd.f32 0.0, %v1658
        %1660 = vmatprep.mubr.f32.mxu0 0.0
        %1661 = vmatmul.mubr.f32.gmra.mrb[0].mxu0 %v1588
        %v1662 = vpop.f32.mrb[0].mxu0
        %v1663 = vadd.f32 0.0, %v1662
        %v1664 = vpop.f32.mrb[0].mxu0
        %v1665 = vadd.f32 0.0, %v1664
        %1666 = vdwg.mxu0
        %1667 = vmatprep.subr.mxu0 0.0
        %1668 = vmatpush1.msra.mxu0 %v1576
        %1669 = vmatprep.subr.mxu0 0.0
        %1670 = vmatpush1.msra.mxu0 %v1579
        %1671 = vmatprep.subr.mxu0 0.0
        %1672 = vmatpush1.msra.mxu0 0.0
        %1673 = vmatprep.subr.mxu0 0.0
        %1674 = vmatpush1.msra.mxu0 0.0
        %1675 = vmatprep.subr.mxu0 0.0
        %1676 = vmatpush1.msra.mxu0 0.0
        %1677 = vmatprep.subr.mxu0 0.0
        %1678 = vmatpush1.msra.mxu0 0.0
        %1679 = vmatprep.subr.mxu0 0.0
        %1680 = vmatpush1.msra.mxu0 0.0
        %1681 = vmatprep.subr.mxu0 0.0
        %1682 = vmatpush1.msra.mxu0 0.0
        %1683 = vmatprep.subr.mxu0 0.0
        %1684 = vmatpush1.msra.mxu0 0.0
        %1685 = vmatprep.subr.mxu0 0.0
        %1686 = vmatpush1.msra.mxu0 0.0
        %1687 = vmatprep.subr.mxu0 0.0
        %1688 = vmatpush1.msra.mxu0 0.0
        %1689 = vmatprep.subr.mxu0 0.0
        %1690 = vmatpush1.msra.mxu0 0.0
        %1691 = vmatprep.subr.mxu0 0.0
        %1692 = vmatpush1.msra.mxu0 0.0
        %1693 = vmatprep.subr.mxu0 0.0
        %1694 = vmatpush1.msra.mxu0 0.0
        %1695 = vmatprep.subr.mxu0 0.0
        %1696 = vmatpush1.msra.mxu0 0.0
        %1697 = vmatprep.subr.mxu0 0.0
        %1698 = vmatpush1.msra.mxu0 0.0
        %1699 = vmatprep.subr.mxu0 0.0
        %1700 = vmatpush1.msra.mxu0 0.0
        %1701 = vmatprep.subr.mxu0 0.0
        %1702 = vmatpush1.msra.mxu0 0.0
        %1703 = vmatprep.subr.mxu0 0.0
        %1704 = vmatpush1.msra.mxu0 0.0
        %1705 = vmatprep.subr.mxu0 0.0
        %1706 = vmatpush1.msra.mxu0 0.0
        %1707 = vmatprep.subr.mxu0 0.0
        %1708 = vmatpush1.msra.mxu0 0.0
        %1709 = vmatprep.subr.mxu0 0.0
        %1710 = vmatpush1.msra.mxu0 0.0
        %1711 = vmatprep.subr.mxu0 0.0
        %1712 = vmatpush1.msra.mxu0 0.0
        %1713 = vmatprep.subr.mxu0 0.0
        %1714 = vmatpush1.msra.mxu0 0.0
        %1715 = vmatprep.subr.mxu0 0.0
        %1716 = vmatpush1.msra.mxu0 0.0
        %1717 = vmatprep.subr.mxu0 0.0
        %1718 = vmatpush1.msra.mxu0 0.0
        %1719 = vmatprep.subr.mxu0 0.0
        %1720 = vmatpush1.msra.mxu0 0.0
        %1721 = vmatprep.subr.mxu0 0.0
        %1722 = vmatpush1.msra.mxu0 0.0
        %1723 = vmatprep.subr.mxu0 0.0
        %1724 = vmatpush1.msra.mxu0 0.0
        %1725 = vmatprep.subr.mxu0 0.0
        %1726 = vmatpush1.msra.mxu0 0.0
        %1727 = vmatprep.subr.mxu0 0.0
        %1728 = vmatpush1.msra.mxu0 0.0
        %1729 = vmatprep.subr.mxu0 0.0
        %1730 = vmatpush1.msra.mxu0 0.0
        %1731 = vmatprep.mubr.f32.mxu0 0.0
        %1732 = vmatmul.mubr.f32.gmra.mrb[0].mxu0 %v1586
        %v1733 = vpop.f32.mrb[0].mxu0
        %v1734 = vadd.f32 0.0, %v1733
        %v1735 = vpop.f32.mrb[0].mxu0
        %1736 = vmatprep.mubr.f32.mxu0 0.0
        %1737 = vmatmul.mubr.f32.gmra.mrb[0].mxu0 %v1588
        %v1738 = vpop.f32.mrb[0].mxu0
        %v1739 = vadd.f32 0.0, %v1738
        %v1740 = vpop.f32.mrb[0].mxu0
        %1741 = vdwg.mxu0
        %v1742 = vadd.f32 %v1532, %v1657
        %v1743 = vadd.f32 %v1533, %v1659
        %v1744 = vadd.f32 %v1534, %v1734
        %v1745 = vadd.f32 %v1535, %v1663
        %v1746 = vadd.f32 %v1536, %v1665
        %v1747 = vadd.f32 %v1537, %v1739
        %1748 = vrot.lane.b32.xlu0 %v589, 32
        %v1749 = vpop.permute.xlu0 %1748
        %1750 = vrot.lane.b32.xlu0 %v591, 32
        %v1751 = vpop.permute.xlu0 %1750
        %1752 = vrot.lane.b32.xlu0 %v1538, 111
        %v1753 = vpop.permute.xlu0 %1752
        %1754 = vrot.lane.b32.xlu0 %v1539, 111
        %v1755 = vpop.permute.xlu0 %1754
        %1756 = vrot.lane.b32.xlu0 %v1540, 111
        %v1757 = vpop.permute.xlu0 %1756
        %1758 = vrot.lane.b32.xlu0 %v1541, 111
        %v1759 = vpop.permute.xlu0 %1758
        %1760 = vrot.lane.b32.xlu0 %v1542, 111
        %v1761 = vpop.permute.xlu0 %1760
        %1762 = vrot.lane.b32.xlu0 %v1543, 111
        %v1763 = vpop.permute.xlu0 %1762
        %1764 = vrot.lane.b32.xlu0 %v1544, 111
        %v1765 = vpop.permute.xlu0 %1764
        %1766 = vrot.lane.b32.xlu0 %v1545, 111
        %v1767 = vpop.permute.xlu0 %1766
        %v1768 = vsel %vm337, %v1753, %v1755
        %v1769 = vsel %vm337, %v1755, %v1757
        %v1770 = vsel %vm337, %v1757, %v1759
        %v1771 = vsel %vm337, %v1761, %v1763
        %v1772 = vsel %vm337, %v1763, %v1765
        %v1773 = vsel %vm337, %v1765, %v1767
        %v1780 = vsel %vm643, %v1749, 0
        %v1782 = vsel %vm643, %v1751, 0
        %1784 = vmatprep.subr.mxu0 %v1769
        %1785 = vmatpush1.msra.mxu0 %v1768
        %1786 = vmatprep.subr.mxu0 %v1772
        %1787 = vmatpush1.msra.mxu0 %v1771
        %1788 = vmatprep.subr.mxu0 0.0
        %1789 = vmatpush1.msra.mxu0 0.0
        %1790 = vmatprep.subr.mxu0 0.0
        %1791 = vmatpush1.msra.mxu0 0.0
        %1792 = vmatprep.subr.mxu0 0.0
        %1793 = vmatpush1.msra.mxu0 0.0
        %1794 = vmatprep.subr.mxu0 0.0
        %1795 = vmatpush1.msra.mxu0 0.0
        %1796 = vmatprep.subr.mxu0 0.0
        %1797 = vmatpush1.msra.mxu0 0.0
        %1798 = vmatprep.subr.mxu0 0.0
        %1799 = vmatpush1.msra.mxu0 0.0
        %1800 = vmatprep.subr.mxu0 0.0
        %1801 = vmatpush1.msra.mxu0 0.0
        %1802 = vmatprep.subr.mxu0 0.0
        %1803 = vmatpush1.msra.mxu0 0.0
        %1804 = vmatprep.subr.mxu0 0.0
        %1805 = vmatpush1.msra.mxu0 0.0
        %1806 = vmatprep.subr.mxu0 0.0
        %1807 = vmatpush1.msra.mxu0 0.0
        %1808 = vmatprep.subr.mxu0 0.0
        %1809 = vmatpush1.msra.mxu0 0.0
        %1810 = vmatprep.subr.mxu0 0.0
        %1811 = vmatpush1.msra.mxu0 0.0
        %1812 = vmatprep.subr.mxu0 0.0
        %1813 = vmatpush1.msra.mxu0 0.0
        %1814 = vmatprep.subr.mxu0 0.0
        %1815 = vmatpush1.msra.mxu0 0.0
        %1816 = vmatprep.subr.mxu0 0.0
        %1817 = vmatpush1.msra.mxu0 0.0
        %1818 = vmatprep.subr.mxu0 0.0
        %1819 = vmatpush1.msra.mxu0 0.0
        %1820 = vmatprep.subr.mxu0 0.0
        %1821 = vmatpush1.msra.mxu0 0.0
        %1822 = vmatprep.subr.mxu0 0.0
        %1823 = vmatpush1.msra.mxu0 0.0
        %1824 = vmatprep.subr.mxu0 0.0
        %1825 = vmatpush1.msra.mxu0 0.0
        %1826 = vmatprep.subr.mxu0 0.0
        %1827 = vmatpush1.msra.mxu0 0.0
        %1828 = vmatprep.subr.mxu0 0.0
        %1829 = vmatpush1.msra.mxu0 0.0
        %1830 = vmatprep.subr.mxu0 0.0
        %1831 = vmatpush1.msra.mxu0 0.0
        %1832 = vmatprep.subr.mxu0 0.0
        %1833 = vmatpush1.msra.mxu0 0.0
        %1834 = vmatprep.subr.mxu0 0.0
        %1835 = vmatpush1.msra.mxu0 0.0
        %1836 = vmatprep.subr.mxu0 0.0
        %1837 = vmatpush1.msra.mxu0 0.0
        %1838 = vmatprep.subr.mxu0 0.0
        %1839 = vmatpush1.msra.mxu0 0.0
        %1840 = vmatprep.subr.mxu0 0.0
        %1841 = vmatpush1.msra.mxu0 0.0
        %1842 = vmatprep.subr.mxu0 0.0
        %1843 = vmatpush1.msra.mxu0 0.0
        %1844 = vmatprep.subr.mxu0 0.0
        %1845 = vmatpush1.msra.mxu0 0.0
        %1846 = vmatprep.subr.mxu0 0.0
        %1847 = vmatpush1.msra.mxu0 0.0
        %1848 = vmatprep.mubr.f32.mxu0 0.0
        %1849 = vmatmul.mubr.f32.gmra.mrb[0].mxu0 %v1780
        %v1850 = vpop.f32.mrb[0].mxu0
        %v1851 = vadd.f32 0.0, %v1850
        %v1852 = vpop.f32.mrb[0].mxu0
        %v1853 = vadd.f32 0.0, %v1852
        %1854 = vmatprep.mubr.f32.mxu0 0.0
        %1855 = vmatmul.mubr.f32.gmra.mrb[0].mxu0 %v1782
        %v1856 = vpop.f32.mrb[0].mxu0
        %v1857 = vadd.f32 0.0, %v1856
        %v1858 = vpop.f32.mrb[0].mxu0
        %v1859 = vadd.f32 0.0, %v1858
        %1860 = vdwg.mxu0
        %1861 = vmatprep.subr.mxu0 0.0
        %1862 = vmatpush1.msra.mxu0 %v1770
        %1863 = vmatprep.subr.mxu0 0.0
        %1864 = vmatpush1.msra.mxu0 %v1773
        %1865 = vmatprep.subr.mxu0 0.0
        %1866 = vmatpush1.msra.mxu0 0.0
        %1867 = vmatprep.subr.mxu0 0.0
        %1868 = vmatpush1.msra.mxu0 0.0
        %1869 = vmatprep.subr.mxu0 0.0
        %1870 = vmatpush1.msra.mxu0 0.0
        %1871 = vmatprep.subr.mxu0 0.0
        %1872 = vmatpush1.msra.mxu0 0.0
        %1873 = vmatprep.subr.mxu0 0.0
        %1874 = vmatpush1.msra.mxu0 0.0
        %1875 = vmatprep.subr.mxu0 0.0
        %1876 = vmatpush1.msra.mxu0 0.0
        %1877 = vmatprep.subr.mxu0 0.0
        %1878 = vmatpush1.msra.mxu0 0.0
        %1879 = vmatprep.subr.mxu0 0.0
        %1880 = vmatpush1.msra.mxu0 0.0
        %1881 = vmatprep.subr.mxu0 0.0
        %1882 = vmatpush1.msra.mxu0 0.0
        %1883 = vmatprep.subr.mxu0 0.0
        %1884 = vmatpush1.msra.mxu0 0.0
        %1885 = vmatprep.subr.mxu0 0.0
        %1886 = vmatpush1.msra.mxu0 0.0
        %1887 = vmatprep.subr.mxu0 0.0
        %1888 = vmatpush1.msra.mxu0 0.0
        %1889 = vmatprep.subr.mxu0 0.0
        %1890 = vmatpush1.msra.mxu0 0.0
        %1891 = vmatprep.subr.mxu0 0.0
        %1892 = vmatpush1.msra.mxu0 0.0
        %1893 = vmatprep.subr.mxu0 0.0
        %1894 = vmatpush1.msra.mxu0 0.0
        %1895 = vmatprep.subr.mxu0 0.0
        %1896 = vmatpush1.msra.mxu0 0.0
        %1897 = vmatprep.subr.mxu0 0.0
        %1898 = vmatpush1.msra.mxu0 0.0
        %1899 = vmatprep.subr.mxu0 0.0
        %1900 = vmatpush1.msra.mxu0 0.0
        %1901 = vmatprep.subr.mxu0 0.0
        %1902 = vmatpush1.msra.mxu0 0.0
        %1903 = vmatprep.subr.mxu0 0.0
        %1904 = vmatpush1.msra.mxu0 0.0
        %1905 = vmatprep.subr.mxu0 0.0
        %1906 = vmatpush1.msra.mxu0 0.0
        %1907 = vmatprep.subr.mxu0 0.0
        %1908 = vmatpush1.msra.mxu0 0.0
        %1909 = vmatprep.subr.mxu0 0.0
        %1910 = vmatpush1.msra.mxu0 0.0
        %1911 = vmatprep.subr.mxu0 0.0
        %1912 = vmatpush1.msra.mxu0 0.0
        %1913 = vmatprep.subr.mxu0 0.0
        %1914 = vmatpush1.msra.mxu0 0.0
        %1915 = vmatprep.subr.mxu0 0.0
        %1916 = vmatpush1.msra.mxu0 0.0
        %1917 = vmatprep.subr.mxu0 0.0
        %1918 = vmatpush1.msra.mxu0 0.0
        %1919 = vmatprep.subr.mxu0 0.0
        %1920 = vmatpush1.msra.mxu0 0.0
        %1921 = vmatprep.subr.mxu0 0.0
        %1922 = vmatpush1.msra.mxu0 0.0
        %1923 = vmatprep.subr.mxu0 0.0
        %1924 = vmatpush1.msra.mxu0 0.0
        %1925 = vmatprep.mubr.f32.mxu0 0.0
        %1926 = vmatmul.mubr.f32.gmra.mrb[0].mxu0 %v1780
        %v1927 = vpop.f32.mrb[0].mxu0
        %v1928 = vadd.f32 0.0, %v1927
        %v1929 = vpop.f32.mrb[0].mxu0
        %1930 = vmatprep.mubr.f32.mxu0 0.0
        %1931 = vmatmul.mubr.f32.gmra.mrb[0].mxu0 %v1782
        %v1932 = vpop.f32.mrb[0].mxu0
        %v1933 = vadd.f32 0.0, %v1932
        %v1934 = vpop.f32.mrb[0].mxu0
        %1935 = vdwg.mxu0
        %v1936 = vadd.f32 %v1742, %v1851
        %v1937 = vadd.f32 %v1743, %v1853
        %v1938 = vadd.f32 %v1744, %v1928
        %v1939 = vadd.f32 %v1745, %v1857
        %v1940 = vadd.f32 %v1746, %v1859
        %v1941 = vadd.f32 %v1747, %v1933
        %1942 = vrot.lane.b32.xlu0 %v589, 16
        %v1943 = vpop.permute.xlu0 %1942
        %1944 = vrot.lane.b32.xlu0 %v591, 16
        %v1945 = vpop.permute.xlu0 %1944
        %1946 = vrot.lane.b32.xlu0 %v1538, 110
        %v1947 = vpop.permute.xlu0 %1946
        %1948 = vrot.lane.b32.xlu0 %v1539, 110
        %v1949 = vpop.permute.xlu0 %1948
        %1950 = vrot.lane.b32.xlu0 %v1540, 110
        %v1951 = vpop.permute.xlu0 %1950
        %1952 = vrot.lane.b32.xlu0 %v1541, 110
        %v1953 = vpop.permute.xlu0 %1952
        %1954 = vrot.lane.b32.xlu0 %v1542, 110
        %v1955 = vpop.permute.xlu0 %1954
        %1956 = vrot.lane.b32.xlu0 %v1543, 110
        %v1957 = vpop.permute.xlu0 %1956
        %1958 = vrot.lane.b32.xlu0 %v1544, 110
        %v1959 = vpop.permute.xlu0 %1958
        %1960 = vrot.lane.b32.xlu0 %v1545, 110
        %v1961 = vpop.permute.xlu0 %1960
        %v1962 = vsel %vm348, %v1947, %v1949
        %v1963 = vsel %vm348, %v1949, %v1951
        %v1964 = vsel %vm348, %v1951, %v1953
        %v1965 = vsel %vm348, %v1955, %v1957
        %v1966 = vsel %vm348, %v1957, %v1959
        %v1967 = vsel %vm348, %v1959, %v1961
        %v1974 = vsel %vm643, %v1943, 0
        %v1976 = vsel %vm643, %v1945, 0
        %1978 = vmatprep.subr.mxu0 %v1963
        %1979 = vmatpush1.msra.mxu0 %v1962
        %1980 = vmatprep.subr.mxu0 %v1966
        %1981 = vmatpush1.msra.mxu0 %v1965
        %1982 = vmatprep.subr.mxu0 0.0
        %1983 = vmatpush1.msra.mxu0 0.0
        %1984 = vmatprep.subr.mxu0 0.0
        %1985 = vmatpush1.msra.mxu0 0.0
        %1986 = vmatprep.subr.mxu0 0.0
        %1987 = vmatpush1.msra.mxu0 0.0
        %1988 = vmatprep.subr.mxu0 0.0
        %1989 = vmatpush1.msra.mxu0 0.0
        %1990 = vmatprep.subr.mxu0 0.0
        %1991 = vmatpush1.msra.mxu0 0.0
        %1992 = vmatprep.subr.mxu0 0.0
        %1993 = vmatpush1.msra.mxu0 0.0
        %1994 = vmatprep.subr.mxu0 0.0
        %1995 = vmatpush1.msra.mxu0 0.0
        %1996 = vmatprep.subr.mxu0 0.0
        %1997 = vmatpush1.msra.mxu0 0.0
        %1998 = vmatprep.subr.mxu0 0.0
        %1999 = vmatpush1.msra.mxu0 0.0
        %2000 = vmatprep.subr.mxu0 0.0
        %2001 = vmatpush1.msra.mxu0 0.0
        %2002 = vmatprep.subr.mxu0 0.0
        %2003 = vmatpush1.msra.mxu0 0.0
        %2004 = vmatprep.subr.mxu0 0.0
        %2005 = vmatpush1.msra.mxu0 0.0
        %2006 = vmatprep.subr.mxu0 0.0
        %2007 = vmatpush1.msra.mxu0 0.0
        %2008 = vmatprep.subr.mxu0 0.0
        %2009 = vmatpush1.msra.mxu0 0.0
        %2010 = vmatprep.subr.mxu0 0.0
        %2011 = vmatpush1.msra.mxu0 0.0
        %2012 = vmatprep.subr.mxu0 0.0
        %2013 = vmatpush1.msra.mxu0 0.0
        %2014 = vmatprep.subr.mxu0 0.0
        %2015 = vmatpush1.msra.mxu0 0.0
        %2016 = vmatprep.subr.mxu0 0.0
        %2017 = vmatpush1.msra.mxu0 0.0
        %2018 = vmatprep.subr.mxu0 0.0
        %2019 = vmatpush1.msra.mxu0 0.0
        %2020 = vmatprep.subr.mxu0 0.0
        %2021 = vmatpush1.msra.mxu0 0.0
        %2022 = vmatprep.subr.mxu0 0.0
        %2023 = vmatpush1.msra.mxu0 0.0
        %2024 = vmatprep.subr.mxu0 0.0
        %2025 = vmatpush1.msra.mxu0 0.0
        %2026 = vmatprep.subr.mxu0 0.0
        %2027 = vmatpush1.msra.mxu0 0.0
        %2028 = vmatprep.subr.mxu0 0.0
        %2029 = vmatpush1.msra.mxu0 0.0
        %2030 = vmatprep.subr.mxu0 0.0
        %2031 = vmatpush1.msra.mxu0 0.0
        %2032 = vmatprep.subr.mxu0 0.0
        %2033 = vmatpush1.msra.mxu0 0.0
        %2034 = vmatprep.subr.mxu0 0.0
        %2035 = vmatpush1.msra.mxu0 0.0
        %2036 = vmatprep.subr.mxu0 0.0
        %2037 = vmatpush1.msra.mxu0 0.0
        %2038 = vmatprep.subr.mxu0 0.0
        %2039 = vmatpush1.msra.mxu0 0.0
        %2040 = vmatprep.subr.mxu0 0.0
        %2041 = vmatpush1.msra.mxu0 0.0
        %2042 = vmatprep.mubr.f32.mxu0 0.0
        %2043 = vmatmul.mubr.f32.gmra.mrb[0].mxu0 %v1974
        %v2044 = vpop.f32.mrb[0].mxu0
        %v2045 = vadd.f32 0.0, %v2044
        %v2046 = vpop.f32.mrb[0].mxu0
        %v2047 = vadd.f32 0.0, %v2046
        %2048 = vmatprep.mubr.f32.mxu0 0.0
        %2049 = vmatmul.mubr.f32.gmra.mrb[0].mxu0 %v1976
        %v2050 = vpop.f32.mrb[0].mxu0
        %v2051 = vadd.f32 0.0, %v2050
        %v2052 = vpop.f32.mrb[0].mxu0
        %v2053 = vadd.f32 0.0, %v2052
        %2054 = vdwg.mxu0
        %2055 = vmatprep.subr.mxu0 0.0
        %2056 = vmatpush1.msra.mxu0 %v1964
        %2057 = vmatprep.subr.mxu0 0.0
        %2058 = vmatpush1.msra.mxu0 %v1967
        %2059 = vmatprep.subr.mxu0 0.0
        %2060 = vmatpush1.msra.mxu0 0.0
        %2061 = vmatprep.subr.mxu0 0.0
        %2062 = vmatpush1.msra.mxu0 0.0
        %2063 = vmatprep.subr.mxu0 0.0
        %2064 = vmatpush1.msra.mxu0 0.0
        %2065 = vmatprep.subr.mxu0 0.0
        %2066 = vmatpush1.msra.mxu0 0.0
        %2067 = vmatprep.subr.mxu0 0.0
        %2068 = vmatpush1.msra.mxu0 0.0
        %2069 = vmatprep.subr.mxu0 0.0
        %2070 = vmatpush1.msra.mxu0 0.0
        %2071 = vmatprep.subr.mxu0 0.0
        %2072 = vmatpush1.msra.mxu0 0.0
        %2073 = vmatprep.subr.mxu0 0.0
        %2074 = vmatpush1.msra.mxu0 0.0
        %2075 = vmatprep.subr.mxu0 0.0
        %2076 = vmatpush1.msra.mxu0 0.0
        %2077 = vmatprep.subr.mxu0 0.0
        %2078 = vmatpush1.msra.mxu0 0.0
        %2079 = vmatprep.subr.mxu0 0.0
        %2080 = vmatpush1.msra.mxu0 0.0
        %2081 = vmatprep.subr.mxu0 0.0
        %2082 = vmatpush1.msra.mxu0 0.0
        %2083 = vmatprep.subr.mxu0 0.0
        %2084 = vmatpush1.msra.mxu0 0.0
        %2085 = vmatprep.subr.mxu0 0.0
        %2086 = vmatpush1.msra.mxu0 0.0
        %2087 = vmatprep.subr.mxu0 0.0
        %2088 = vmatpush1.msra.mxu0 0.0
        %2089 = vmatprep.subr.mxu0 0.0
        %2090 = vmatpush1.msra.mxu0 0.0
        %2091 = vmatprep.subr.mxu0 0.0
        %2092 = vmatpush1.msra.mxu0 0.0
        %2093 = vmatprep.subr.mxu0 0.0
        %2094 = vmatpush1.msra.mxu0 0.0
        %2095 = vmatprep.subr.mxu0 0.0
        %2096 = vmatpush1.msra.mxu0 0.0
        %2097 = vmatprep.subr.mxu0 0.0
        %2098 = vmatpush1.msra.mxu0 0.0
        %2099 = vmatprep.subr.mxu0 0.0
        %2100 = vmatpush1.msra.mxu0 0.0
        %2101 = vmatprep.subr.mxu0 0.0
        %2102 = vmatpush1.msra.mxu0 0.0
        %2103 = vmatprep.subr.mxu0 0.0
        %2104 = vmatpush1.msra.mxu0 0.0
        %2105 = vmatprep.subr.mxu0 0.0
        %2106 = vmatpush1.msra.mxu0 0.0
        %2107 = vmatprep.subr.mxu0 0.0
        %2108 = vmatpush1.msra.mxu0 0.0
        %2109 = vmatprep.subr.mxu0 0.0
        %2110 = vmatpush1.msra.mxu0 0.0
        %2111 = vmatprep.subr.mxu0 0.0
        %2112 = vmatpush1.msra.mxu0 0.0
        %2113 = vmatprep.subr.mxu0 0.0
        %2114 = vmatpush1.msra.mxu0 0.0
        %2115 = vmatprep.subr.mxu0 0.0
        %2116 = vmatpush1.msra.mxu0 0.0
        %2117 = vmatprep.subr.mxu0 0.0
        %2118 = vmatpush1.msra.mxu0 0.0
        %2119 = vmatprep.mubr.f32.mxu0 0.0
        %2120 = vmatmul.mubr.f32.gmra.mrb[0].mxu0 %v1974
        %v2121 = vpop.f32.mrb[0].mxu0
        %v2122 = vadd.f32 0.0, %v2121
        %v2123 = vpop.f32.mrb[0].mxu0
        %2124 = vmatprep.mubr.f32.mxu0 0.0
        %2125 = vmatmul.mubr.f32.gmra.mrb[0].mxu0 %v1976
        %v2126 = vpop.f32.mrb[0].mxu0
        %v2127 = vadd.f32 0.0, %v2126
        %v2128 = vpop.f32.mrb[0].mxu0
        %2129 = vdwg.mxu0
        %v2130 = vadd.f32 %v1936, %v2045
        %v2131 = vadd.f32 %v1937, %v2047
        %v2132 = vadd.f32 %v1938, %v2122
        %v2133 = vadd.f32 %v1939, %v2051
        %v2134 = vadd.f32 %v1940, %v2053
        %v2135 = vadd.f32 %v1941, %v2127
        %2136 = vrot.lane.b32.xlu0 %v1538, 109
        %v2137 = vpop.permute.xlu0 %2136
        %2138 = vrot.lane.b32.xlu0 %v1539, 109
        %v2139 = vpop.permute.xlu0 %2138
        %2140 = vrot.lane.b32.xlu0 %v1540, 109
        %v2141 = vpop.permute.xlu0 %2140
        %2142 = vrot.lane.b32.xlu0 %v1541, 109
        %v2143 = vpop.permute.xlu0 %2142
        %2144 = vrot.lane.b32.xlu0 %v1542, 109
        %v2145 = vpop.permute.xlu0 %2144
        %2146 = vrot.lane.b32.xlu0 %v1543, 109
        %v2147 = vpop.permute.xlu0 %2146
        %2148 = vrot.lane.b32.xlu0 %v1544, 109
        %v2149 = vpop.permute.xlu0 %2148
        %2150 = vrot.lane.b32.xlu0 %v1545, 109
        %v2151 = vpop.permute.xlu0 %2150
        %v2152 = vsel %vm359, %v2137, %v2139
        %v2153 = vsel %vm359, %v2139, %v2141
        %v2154 = vsel %vm359, %v2141, %v2143
        %v2155 = vsel %vm359, %v2145, %v2147
        %v2156 = vsel %vm359, %v2147, %v2149
        %v2157 = vsel %vm359, %v2149, %v2151
        %v2165 = vsel %vm643, %v590, 0
        %v2168 = vsel %vm643, %v592, 0
        %2170 = vmatprep.subr.mxu0 %v2153
        %2171 = vmatpush1.msra.mxu0 %v2152
        %2172 = vmatprep.subr.mxu0 %v2156
        %2173 = vmatpush1.msra.mxu0 %v2155
        %2174 = vmatprep.subr.mxu0 0.0
        %2175 = vmatpush1.msra.mxu0 0.0
        %2176 = vmatprep.subr.mxu0 0.0
        %2177 = vmatpush1.msra.mxu0 0.0
        %2178 = vmatprep.subr.mxu0 0.0
        %2179 = vmatpush1.msra.mxu0 0.0
        %2180 = vmatprep.subr.mxu0 0.0
        %2181 = vmatpush1.msra.mxu0 0.0
        %2182 = vmatprep.subr.mxu0 0.0
        %2183 = vmatpush1.msra.mxu0 0.0
        %2184 = vmatprep.subr.mxu0 0.0
        %2185 = vmatpush1.msra.mxu0 0.0
        %2186 = vmatprep.subr.mxu0 0.0
        %2187 = vmatpush1.msra.mxu0 0.0
        %2188 = vmatprep.subr.mxu0 0.0
        %2189 = vmatpush1.msra.mxu0 0.0
        %2190 = vmatprep.subr.mxu0 0.0
        %2191 = vmatpush1.msra.mxu0 0.0
        %2192 = vmatprep.subr.mxu0 0.0
        %2193 = vmatpush1.msra.mxu0 0.0
        %2194 = vmatprep.subr.mxu0 0.0
        %2195 = vmatpush1.msra.mxu0 0.0
        %2196 = vmatprep.subr.mxu0 0.0
        %2197 = vmatpush1.msra.mxu0 0.0
        %2198 = vmatprep.subr.mxu0 0.0
        %2199 = vmatpush1.msra.mxu0 0.0
        %2200 = vmatprep.subr.mxu0 0.0
        %2201 = vmatpush1.msra.mxu0 0.0
        %2202 = vmatprep.subr.mxu0 0.0
        %2203 = vmatpush1.msra.mxu0 0.0
        %2204 = vmatprep.subr.mxu0 0.0
        %2205 = vmatpush1.msra.mxu0 0.0
        %2206 = vmatprep.subr.mxu0 0.0
        %2207 = vmatpush1.msra.mxu0 0.0
        %2208 = vmatprep.subr.mxu0 0.0
        %2209 = vmatpush1.msra.mxu0 0.0
        %2210 = vmatprep.subr.mxu0 0.0
        %2211 = vmatpush1.msra.mxu0 0.0
        %2212 = vmatprep.subr.mxu0 0.0
        %2213 = vmatpush1.msra.mxu0 0.0
        %2214 = vmatprep.subr.mxu0 0.0
        %2215 = vmatpush1.msra.mxu0 0.0
        %2216 = vmatprep.subr.mxu0 0.0
        %2217 = vmatpush1.msra.mxu0 0.0
        %2218 = vmatprep.subr.mxu0 0.0
        %2219 = vmatpush1.msra.mxu0 0.0
        %2220 = vmatprep.subr.mxu0 0.0
        %2221 = vmatpush1.msra.mxu0 0.0
        %2222 = vmatprep.subr.mxu0 0.0
        %2223 = vmatpush1.msra.mxu0 0.0
        %2224 = vmatprep.subr.mxu0 0.0
        %2225 = vmatpush1.msra.mxu0 0.0
        %2226 = vmatprep.subr.mxu0 0.0
        %2227 = vmatpush1.msra.mxu0 0.0
        %2228 = vmatprep.subr.mxu0 0.0
        %2229 = vmatpush1.msra.mxu0 0.0
        %2230 = vmatprep.subr.mxu0 0.0
        %2231 = vmatpush1.msra.mxu0 0.0
        %2232 = vmatprep.subr.mxu0 0.0
        %2233 = vmatpush1.msra.mxu0 0.0
        %2234 = vmatprep.mubr.f32.mxu0 0.0
        %2235 = vmatmul.mubr.f32.gmra.mrb[0].mxu0 %v2165
        %v2236 = vpop.f32.mrb[0].mxu0
        %v2237 = vadd.f32 0.0, %v2236
        %v2238 = vpop.f32.mrb[0].mxu0
        %v2239 = vadd.f32 0.0, %v2238
        %2240 = vmatprep.mubr.f32.mxu0 0.0
        %2241 = vmatmul.mubr.f32.gmra.mrb[0].mxu0 %v2168
        %v2242 = vpop.f32.mrb[0].mxu0
        %v2243 = vadd.f32 0.0, %v2242
        %v2244 = vpop.f32.mrb[0].mxu0
        %v2245 = vadd.f32 0.0, %v2244
        %2246 = vdwg.mxu0
        %2247 = vmatprep.subr.mxu0 0.0
        %2248 = vmatpush1.msra.mxu0 %v2154
        %2249 = vmatprep.subr.mxu0 0.0
        %2250 = vmatpush1.msra.mxu0 %v2157
        %2251 = vmatprep.subr.mxu0 0.0
        %2252 = vmatpush1.msra.mxu0 0.0
        %2253 = vmatprep.subr.mxu0 0.0
        %2254 = vmatpush1.msra.mxu0 0.0
        %2255 = vmatprep.subr.mxu0 0.0
        %2256 = vmatpush1.msra.mxu0 0.0
        %2257 = vmatprep.subr.mxu0 0.0
        %2258 = vmatpush1.msra.mxu0 0.0
        %2259 = vmatprep.subr.mxu0 0.0
        %2260 = vmatpush1.msra.mxu0 0.0
        %2261 = vmatprep.subr.mxu0 0.0
        %2262 = vmatpush1.msra.mxu0 0.0
        %2263 = vmatprep.subr.mxu0 0.0
        %2264 = vmatpush1.msra.mxu0 0.0
        %2265 = vmatprep.subr.mxu0 0.0
        %2266 = vmatpush1.msra.mxu0 0.0
        %2267 = vmatprep.subr.mxu0 0.0
        %2268 = vmatpush1.msra.mxu0 0.0
        %2269 = vmatprep.subr.mxu0 0.0
        %2270 = vmatpush1.msra.mxu0 0.0
        %2271 = vmatprep.subr.mxu0 0.0
        %2272 = vmatpush1.msra.mxu0 0.0
        %2273 = vmatprep.subr.mxu0 0.0
        %2274 = vmatpush1.msra.mxu0 0.0
        %2275 = vmatprep.subr.mxu0 0.0
        %2276 = vmatpush1.msra.mxu0 0.0
        %2277 = vmatprep.subr.mxu0 0.0
        %2278 = vmatpush1.msra.mxu0 0.0
        %2279 = vmatprep.subr.mxu0 0.0
        %2280 = vmatpush1.msra.mxu0 0.0
        %2281 = vmatprep.subr.mxu0 0.0
        %2282 = vmatpush1.msra.mxu0 0.0
        %2283 = vmatprep.subr.mxu0 0.0
        %2284 = vmatpush1.msra.mxu0 0.0
        %2285 = vmatprep.subr.mxu0 0.0
        %2286 = vmatpush1.msra.mxu0 0.0
        %2287 = vmatprep.subr.mxu0 0.0
        %2288 = vmatpush1.msra.mxu0 0.0
        %2289 = vmatprep.subr.mxu0 0.0
        %2290 = vmatpush1.msra.mxu0 0.0
        %2291 = vmatprep.subr.mxu0 0.0
        %2292 = vmatpush1.msra.mxu0 0.0
        %2293 = vmatprep.subr.mxu0 0.0
        %2294 = vmatpush1.msra.mxu0 0.0
        %2295 = vmatprep.subr.mxu0 0.0
        %2296 = vmatpush1.msra.mxu0 0.0
        %2297 = vmatprep.subr.mxu0 0.0
        %2298 = vmatpush1.msra.mxu0 0.0
        %2299 = vmatprep.subr.mxu0 0.0
        %2300 = vmatpush1.msra.mxu0 0.0
        %2301 = vmatprep.subr.mxu0 0.0
        %2302 = vmatpush1.msra.mxu0 0.0
        %2303 = vmatprep.subr.mxu0 0.0
        %2304 = vmatpush1.msra.mxu0 0.0
        %2305 = vmatprep.subr.mxu0 0.0
        %2306 = vmatpush1.msra.mxu0 0.0
        %2307 = vmatprep.subr.mxu0 0.0
        %2308 = vmatpush1.msra.mxu0 0.0
        %2309 = vmatprep.subr.mxu0 0.0
        %2310 = vmatpush1.msra.mxu0 0.0
        %2311 = vmatprep.mubr.f32.mxu0 0.0
        %2312 = vmatmul.mubr.f32.gmra.mrb[0].mxu0 %v2165
        %v2313 = vpop.f32.mrb[0].mxu0
        %v2314 = vadd.f32 0.0, %v2313
        %v2315 = vpop.f32.mrb[0].mxu0
        %2316 = vmatprep.mubr.f32.mxu0 0.0
        %2317 = vmatmul.mubr.f32.gmra.mrb[0].mxu0 %v2168
        %v2318 = vpop.f32.mrb[0].mxu0
        %v2319 = vadd.f32 0.0, %v2318
        %v2320 = vpop.f32.mrb[0].mxu0
        %2321 = vdwg.mxu0
        %v2322 = vadd.f32 %v2130, %v2237
        %v2323 = vadd.f32 %v2131, %v2239
        %v2324 = vadd.f32 %v2132, %v2314
        %v2325 = vadd.f32 %v2133, %v2243
        %v2326 = vadd.f32 %v2134, %v2245
        %v2327 = vadd.f32 %v2135, %v2319
        %2328 = vset.pattern.permute.xlu0 16
        %2329 = vperm.xlu0 %2328, %v590
        %v2330 = vpop.permute.xlu0 %2329
        %2332 = vset.pattern.permute.xlu0 16
        %2333 = vperm.xlu0 %2332, %v592
        %v2334 = vpop.permute.xlu0 %2333
        %v2336 = vadd.f32 %v2322, %v2330
        %v2337 = vadd.f32 %v2323, %v2330
        %v2338 = vadd.f32 %v2324, %v2330
        %v2339 = vadd.f32 %v2325, %v2334
        %v2340 = vadd.f32 %v2326, %v2334
        %v2341 = vadd.f32 %v2327, %v2334
        %v2342 = vmax.f32 %v2336, 0.0
        %v2343 = vmax.f32 %v2337, 0.0
        %v2344 = vmax.f32 %v2338, 0.0
        %v2345 = vmax.f32 %v2339, 0.0
        %v2346 = vmax.f32 %v2340, 0.0
        %v2347 = vmax.f32 %v2341, 0.0
        %v2348 = vld [vmem:[%s4] sm:$0xff]
        %2350 = vset.pattern.permute.xlu0 16
        %2351 = vperm.xlu0 %2350, %v2348
        %v2352 = vpop.permute.xlu0 %2351
        %v2354 = vsel %vm643, %v2348, 0
        %2356 = vmatprep.subr.mxu0 %v2343
        %2357 = vmatpush1.msra.mxu0 %v2342
        %2358 = vmatprep.subr.mxu0 %v2346
        %2359 = vmatpush1.msra.mxu0 %v2345
        %2360 = vmatprep.subr.mxu0 0.0
        %2361 = vmatpush1.msra.mxu0 0.0
        %2362 = vmatprep.subr.mxu0 0.0
        %2363 = vmatpush1.msra.mxu0 0.0
        %2364 = vmatprep.subr.mxu0 0.0
        %2365 = vmatpush1.msra.mxu0 0.0
        %2366 = vmatprep.subr.mxu0 0.0
        %2367 = vmatpush1.msra.mxu0 0.0
        %2368 = vmatprep.subr.mxu0 0.0
        %2369 = vmatpush1.msra.mxu0 0.0
        %2370 = vmatprep.subr.mxu0 0.0
        %2371 = vmatpush1.msra.mxu0 0.0
        %2372 = vmatprep.subr.mxu0 0.0
        %2373 = vmatpush1.msra.mxu0 0.0
        %2374 = vmatprep.subr.mxu0 0.0
        %2375 = vmatpush1.msra.mxu0 0.0
        %2376 = vmatprep.subr.mxu0 0.0
        %2377 = vmatpush1.msra.mxu0 0.0
        %2378 = vmatprep.subr.mxu0 0.0
        %2379 = vmatpush1.msra.mxu0 0.0
        %2380 = vmatprep.subr.mxu0 0.0
        %2381 = vmatpush1.msra.mxu0 0.0
        %2382 = vmatprep.subr.mxu0 0.0
        %2383 = vmatpush1.msra.mxu0 0.0
        %2384 = vmatprep.subr.mxu0 0.0
        %2385 = vmatpush1.msra.mxu0 0.0
        %2386 = vmatprep.subr.mxu0 0.0
        %2387 = vmatpush1.msra.mxu0 0.0
        %2388 = vmatprep.subr.mxu0 0.0
        %2389 = vmatpush1.msra.mxu0 0.0
        %2390 = vmatprep.subr.mxu0 0.0
        %2391 = vmatpush1.msra.mxu0 0.0
        %2392 = vmatprep.subr.mxu0 0.0
        %2393 = vmatpush1.msra.mxu0 0.0
        %2394 = vmatprep.subr.mxu0 0.0
        %2395 = vmatpush1.msra.mxu0 0.0
        %2396 = vmatprep.subr.mxu0 0.0
        %2397 = vmatpush1.msra.mxu0 0.0
        %2398 = vmatprep.subr.mxu0 0.0
        %2399 = vmatpush1.msra.mxu0 0.0
        %2400 = vmatprep.subr.mxu0 0.0
        %2401 = vmatpush1.msra.mxu0 0.0
        %2402 = vmatprep.subr.mxu0 0.0
        %2403 = vmatpush1.msra.mxu0 0.0
        %2404 = vmatprep.subr.mxu0 0.0
        %2405 = vmatpush1.msra.mxu0 0.0
        %2406 = vmatprep.subr.mxu0 0.0
        %2407 = vmatpush1.msra.mxu0 0.0
        %2408 = vmatprep.subr.mxu0 0.0
        %2409 = vmatpush1.msra.mxu0 0.0
        %2410 = vmatprep.subr.mxu0 0.0
        %2411 = vmatpush1.msra.mxu0 0.0
        %2412 = vmatprep.subr.mxu0 0.0
        %2413 = vmatpush1.msra.mxu0 0.0
        %2414 = vmatprep.subr.mxu0 0.0
        %2415 = vmatpush1.msra.mxu0 0.0
        %2416 = vmatprep.subr.mxu0 0.0
        %2417 = vmatpush1.msra.mxu0 0.0
        %2418 = vmatprep.subr.mxu0 0.0
        %2419 = vmatpush1.msra.mxu0 0.0
        %2420 = vmatprep.mubr.f32.mxu0 0.0
        %2421 = vmatmul.mubr.f32.gmra.mrb[0].mxu0 %v2354
        %v2422 = vpop.f32.mrb[0].mxu0
        %v2423 = vadd.f32 %v2352, %v2422
        %v2424 = vpop.f32.mrb[0].mxu0
        %v2425 = vadd.f32 %v2352, %v2424
        %2426 = vdwg.mxu0
        %2427 = vmatprep.subr.mxu0 0.0
        %2428 = vmatpush1.msra.mxu0 %v2344
        %2429 = vmatprep.subr.mxu0 0.0
        %2430 = vmatpush1.msra.mxu0 %v2347
        %2431 = vmatprep.subr.mxu0 0.0
        %2432 = vmatpush1.msra.mxu0 0.0
        %2433 = vmatprep.subr.mxu0 0.0
        %2434 = vmatpush1.msra.mxu0 0.0
        %2435 = vmatprep.subr.mxu0 0.0
        %2436 = vmatpush1.msra.mxu0 0.0
        %2437 = vmatprep.subr.mxu0 0.0
        %2438 = vmatpush1.msra.mxu0 0.0
        %2439 = vmatprep.subr.mxu0 0.0
        %2440 = vmatpush1.msra.mxu0 0.0
        %2441 = vmatprep.subr.mxu0 0.0
        %2442 = vmatpush1.msra.mxu0 0.0
        %2443 = vmatprep.subr.mxu0 0.0
        %2444 = vmatpush1.msra.mxu0 0.0
        %2445 = vmatprep.subr.mxu0 0.0
        %2446 = vmatpush1.msra.mxu0 0.0
        %2447 = vmatprep.subr.mxu0 0.0
        %2448 = vmatpush1.msra.mxu0 0.0
        %2449 = vmatprep.subr.mxu0 0.0
        %2450 = vmatpush1.msra.mxu0 0.0
        %2451 = vmatprep.subr.mxu0 0.0
        %2452 = vmatpush1.msra.mxu0 0.0
        %2453 = vmatprep.subr.mxu0 0.0
        %2454 = vmatpush1.msra.mxu0 0.0
        %2455 = vmatprep.subr.mxu0 0.0
        %2456 = vmatpush1.msra.mxu0 0.0
        %2457 = vmatprep.subr.mxu0 0.0
        %2458 = vmatpush1.msra.mxu0 0.0
        %2459 = vmatprep.subr.mxu0 0.0
        %2460 = vmatpush1.msra.mxu0 0.0
        %2461 = vmatprep.subr.mxu0 0.0
        %2462 = vmatpush1.msra.mxu0 0.0
        %2463 = vmatprep.subr.mxu0 0.0
        %2464 = vmatpush1.msra.mxu0 0.0
        %2465 = vmatprep.subr.mxu0 0.0
        %2466 = vmatpush1.msra.mxu0 0.0
        %2467 = vmatprep.subr.mxu0 0.0
        %2468 = vmatpush1.msra.mxu0 0.0
        %2469 = vmatprep.subr.mxu0 0.0
        %2470 = vmatpush1.msra.mxu0 0.0
        %2471 = vmatprep.subr.mxu0 0.0
        %2472 = vmatpush1.msra.mxu0 0.0
        %2473 = vmatprep.subr.mxu0 0.0
        %2474 = vmatpush1.msra.mxu0 0.0
        %2475 = vmatprep.subr.mxu0 0.0
        %2476 = vmatpush1.msra.mxu0 0.0
        %2477 = vmatprep.subr.mxu0 0.0
        %2478 = vmatpush1.msra.mxu0 0.0
        %2479 = vmatprep.subr.mxu0 0.0
        %2480 = vmatpush1.msra.mxu0 0.0
        %2481 = vmatprep.subr.mxu0 0.0
        %2482 = vmatpush1.msra.mxu0 0.0
        %2483 = vmatprep.subr.mxu0 0.0
        %2484 = vmatpush1.msra.mxu0 0.0
        %2485 = vmatprep.subr.mxu0 0.0
        %2486 = vmatpush1.msra.mxu0 0.0
        %2487 = vmatprep.subr.mxu0 0.0
        %2488 = vmatpush1.msra.mxu0 0.0
        %2489 = vmatprep.subr.mxu0 0.0
        %2490 = vmatpush1.msra.mxu0 0.0
        %2491 = vmatprep.mubr.f32.mxu0 0.0
        %2492 = vmatmul.mubr.f32.gmra.mrb[0].mxu0 %v2354
        %v2493 = vpop.f32.mrb[0].mxu0
        %v2494 = vadd.f32 %v2352, %v2493
        %v2495 = vpop.f32.mrb[0].mxu0
        %2496 = vdwg.mxu0
        %v2497 = vlaneseq
        %v2498 = vshrl.u32 %v2497, 7
        %vm2499 = vcmp.lt.s32.totalorder %v2498, 4
        %v2500 = vxor.u32 %v2423, 2147483648
        %v2501 = vxor.u32 %v2425, 2147483648
        %v2502 = vxor.u32 %v2494, 2147483648
        %v2503 = vmul.f32 %v2500, 1.442695
        %v2504 = vpow.pop %v2503
        %v2505 = vmul.f32 %v2501, 1.442695
        %v2506 = vpow.pop %v2505
        %v2507 = vmul.f32 %v2502, 1.442695
        %v2508 = vpow.pop %v2507
        %v2509 = vadd.f32 %v2504, 1.0
        %v2510 = vadd.f32 %v2506, 1.0
        %v2511 = vadd.f32 %v2508, 1.0
        %v2512 = vrcp.pop %v2509
        %v2513 = vmul.f32 1.0, %v2512
        %v2514 = vrcp.pop %v2510
        %v2515 = vmul.f32 1.0, %v2514
        %v2516 = vrcp.pop %v2511
        %v2517 = vmul.f32 1.0, %v2516
        %v2518 = vsel %vm2499, %v2513, %v2423
        %v2519 = vsel %vm2499, %v2515, %v2425
        %v2520 = vsel %vm2499, %v2517, %v2494
        %2521 = vst [vmem:[%s269] sm:$0xff] %v2518
        %2522 = vst [vmem:[%s269 + $0x8] sm:$0xff] %v2519
        %2523 = vst [vmem:[%s269 + $0x10] sm:$0xff] %v2520
        %s2524 = sand.u32 %s141, 1
        %s2525 = scalar_lea.sflag [#allocation6], %s2524
        %s2526 = sand.u32 %s141, 1
        %s2527 = smul.addr %s2526, 24
        %s2528 = scalar_lea.vmem [#allocation10], %s2527
        // Predicated region
        $region53: #{tpu_custom_call.1} parent=39 // pred_check
          %p2529 = pneg %p151
        $region54: #{tpu_custom_call.1} parent=39 // pred_check_branch
          %2531 = sbr.rel (%p2529) target = $region56
        $region55: #{tpu_custom_call.1} parent=39 // pred_region
          %s2533 = ssub.s32 384, 384
          %2534 = vsyncadd %s2525, %s2533
          %s2535 = smul.addr %s23, 3
          %s2536 = smul.addr %s2535, 128
          %s2537 = scalar_lea.hbm %s5, %s2536
          %s2539 = sshll.u32 %s2528, 4
          %s2540 = int_to_ptr.vmem [resolvable:$true] %s2539
          %2542 = dma.vmem_to_hbm [thread:$0]  %s2540, 384, %s2537, %s2525
        $region56: #{tpu_custom_call.1} parent=39 // pred_fallthru
          _
      $region40: #{tpu_custom_call.1} parent=5 // pred_fallthru
        _
      %p2543 = scmp.le.s32.totalorder 2, %s18
      // Predicated region
      $region57: #{tpu_custom_call.1} parent=5 // pred_check
        %p2544 = pneg %p2543
      $region58: #{tpu_custom_call.1} parent=5 // pred_check_branch
        %2546 = sbr.rel (%p2544) target = $region60
      $region59: #{tpu_custom_call.1} parent=5 // pred_region
        %s2547 = ssub.s32 %s18, 2
        // Predicated region
        $region61: #{tpu_custom_call.1} parent=59 // pred_check
          %p2548 = pneg %p157
        $region62: #{tpu_custom_call.1} parent=59 // pred_check_branch
          %2550 = sbr.rel (%p2548) target = $region64
        $region63: #{tpu_custom_call.1} parent=59 // pred_region
          %s2551 = sand.u32 %s142, 1
          %s2552 = scalar_lea.sflag [#allocation6], %s2551
          %s2553 = sand.u32 %s142, 1
          %s2554 = smul.addr %s2553, 24
          %s2555 = scalar_lea.vmem [#allocation10], %s2554
          %2556 = dma.done %s2552, 384
        $region64: #{tpu_custom_call.1} parent=59 // pred_fallthru
          _
      $region60: #{tpu_custom_call.1} parent=5 // pred_fallthru
        _
    $region6: #{tpu_custom_call.1} parent=1 // loop_footer
      %s22 = sadd.s32 1, %s18
    $region7: #{tpu_custom_call.1} parent=1 // loop_footer_branch
      %17 = sbr.rel target = $region3
    $region8: #{tpu_custom_call.1} parent=1 // loop_exit
      _
    %2557 = vsyncpa [#allocation5], 1
    %s2558 = scalar_lea.sflag [#allocation5], 1
    %2559 = vsyncpa %s2558, 1
    %2560 = vsyncpa [#allocation8], 1
    %2561 = vsyncpa [#allocation6], 1
    %s2562 = scalar_lea.sflag [#allocation6], 1
    %2563 = vsyncpa %s2562, 1

</llo_original>
